<compile_context>
chip_gen: v6e
topology: v6e:2x2x1
jax: 0.10.0
libtpu: 0.0.40
codegen_flags: <defaults>
</compile_context>

<pallas_src>
import jax
import jax.numpy as jnp
from jax.experimental import pallas as pl
from jax.experimental.pallas import tpu as pltpu

TEXT_DIM = 768
IMAGE_DIM = 2048
LANE = 128
SUBLANE = 8


def _round_up(x, m):
    return (x + m - 1) // m * m


def _fusion_kernel(t_ref, i_ref, wt_ref, bt_ref, wi_ref, bi_ref,
                   wct_ref, wci_ref, bc_ref, out_ref):
    # In-kernel bf16 cast of the streamed f32 activations (hides under DMA/MXU).
    t_bf = t_ref[...].astype(jnp.bfloat16)
    i_bf = i_ref[...].astype(jnp.bfloat16)

    # text projection + ReLU (bf16 MXU inputs, f32 accumulate / epilogue)
    t_proj = jnp.dot(t_bf, wt_ref[...], preferred_element_type=jnp.float32)
    t_proj = jnp.maximum(t_proj + bt_ref[...], 0.0)
    # first classifier push (K = Hp) — equivalent to classifier over concat,
    # split so it can overlap the image projection below
    logits = jnp.dot(t_proj.astype(jnp.bfloat16), wct_ref[...],
                     preferred_element_type=jnp.float32)

    # image projection + ReLU
    i_proj = jnp.dot(i_bf, wi_ref[...], preferred_element_type=jnp.float32)
    i_proj = jnp.maximum(i_proj + bi_ref[...], 0.0)
    # second classifier push, accumulated in f32
    logits = logits + jnp.dot(i_proj.astype(jnp.bfloat16), wci_ref[...],
                              preferred_element_type=jnp.float32)

    out_ref[...] = (logits + bc_ref[...]).astype(out_ref.dtype)


def init_params(key, hidden_dim, num_classes):
    """PyTorch-equivalent f32 parameters, weights stored [in, out]."""
    ks = jax.random.split(key, 6)
    wt = jax.random.normal(ks[0], (TEXT_DIM, hidden_dim), jnp.float32) * 0.02
    bt = jax.random.normal(ks[1], (hidden_dim,), jnp.float32) * 0.02
    wi = jax.random.normal(ks[2], (IMAGE_DIM, hidden_dim), jnp.float32) * 0.02
    bi = jax.random.normal(ks[3], (hidden_dim,), jnp.float32) * 0.02
    wc = jax.random.normal(ks[4], (2 * hidden_dim, num_classes), jnp.float32) * 0.02
    bc = jax.random.normal(ks[5], (num_classes,), jnp.float32) * 0.02
    return dict(wt=wt, bt=bt, wi=wi, bi=bi, wc=wc, bc=bc)


def prepare_params(params):
    """One-time prep: cast weights to bf16, zero-pad H/C to multiples of 128,
    and split the classifier weight into its text/image halves."""
    wt, bt, wi, bi, wc, bc = (params["wt"], params["bt"], params["wi"],
                              params["bi"], params["wc"], params["bc"])
    H = wt.shape[1]
    C = wc.shape[1]
    Hp = _round_up(H, LANE)
    Cp = _round_up(C, LANE)

    wt_p = jnp.zeros((TEXT_DIM, Hp), jnp.bfloat16).at[:, :H].set(
        wt.astype(jnp.bfloat16))
    wi_p = jnp.zeros((IMAGE_DIM, Hp), jnp.bfloat16).at[:, :H].set(
        wi.astype(jnp.bfloat16))
    bt_p = jnp.zeros((1, Hp), jnp.float32).at[:, :H].set(bt.reshape(1, H))
    bi_p = jnp.zeros((1, Hp), jnp.float32).at[:, :H].set(bi.reshape(1, H))

    # classifier weight split once: rows acting on t_proj vs i_proj.  Padded
    # hidden lanes are exact zeros after ReLU (zero weight, zero bias) and the
    # corresponding wct/wci rows are zero, so padding never contributes.
    wct_p = jnp.zeros((Hp, Cp), jnp.bfloat16).at[:H, :C].set(
        wc[:H, :].astype(jnp.bfloat16))
    wci_p = jnp.zeros((Hp, Cp), jnp.bfloat16).at[:H, :C].set(
        wc[H:, :].astype(jnp.bfloat16))
    bc_p = jnp.zeros((1, Cp), jnp.float32).at[:, :C].set(bc.reshape(1, C))

    return dict(wt=wt_p, bt=bt_p, wi=wi_p, bi=bi_p, wct=wct_p, wci=wci_p,
                bc=bc_p, H=H, C=C, Hp=Hp, Cp=Cp)


def _vmem_capacity_bytes():
    try:
        return int(pltpu.get_tpu_info().vmem_capacity_bytes)
    except Exception:
        return 64 << 20  # conservative (v7x-sized) fallback


def _resident_spec(shape, single_buffer):
    """Weights/biases: constant index_map -> stay VMEM-resident across steps."""
    index_map = lambda m: (0, 0)
    if single_buffer:
        try:
            return pl.BlockSpec(shape, index_map, pipeline_mode=pl.Buffered(1))
        except Exception:
            pass  # fall back to the default-pipelined spec
    return pl.BlockSpec(shape, index_map)


def simple_fusion_forward(text_feature, image_feature, prepared):
    """text_feature: [B, 768], image_feature: [B, 2048] -> logits [B, C]."""
    B = text_feature.shape[0]
    Hp, Cp, C = prepared["Hp"], prepared["Cp"], prepared["C"]
    wt_p, bt_p = prepared["wt"], prepared["bt"]
    wi_p, bi_p = prepared["wi"], prepared["bi"]
    wct_p, wci_p, bc_p = prepared["wct"], prepared["wci"], prepared["bc"]

    vmem_cap = _vmem_capacity_bytes()
    big_vmem = vmem_cap >= (100 << 20)        # v5e/v6e: 128 MiB, v7x: 64 MiB/TC
    tm_cap = 512 if big_vmem else 256

    # batch tile: big lane-dense tiles when B is large, otherwise the smallest
    # sublane-aligned tile that covers B.
    TM = tm_cap if B >= tm_cap else _round_up(max(B, 1), SUBLANE)
    if (not big_vmem) and B >= 64 and _round_up(B, TM) // TM == 1:
        # v7x: split a single oversized tile so both TensorCores get work.
        TM = _round_up((B + 1) // 2, SUBLANE)
    Bp = _round_up(B, TM)
    grid = (Bp // TM,)

    # Stream the f32 activations directly; pad only the batch remainder.
    t = text_feature
    i = image_feature
    if Bp != B:
        t = jnp.pad(t, ((0, Bp - B), (0, 0)))
        i = jnp.pad(i, ((0, Bp - B), (0, 0)))
    act_itemsize = t.dtype.itemsize

    weight_bytes = (wt_p.size + wi_p.size + wct_p.size + wci_p.size) * 2 \
        + (bt_p.size + bi_p.size + bc_p.size) * 4
    # single-buffer the VMEM-resident weights only when they matter; tiny
    # configs stay on the plain, universally-supported path.
    single_buffer_weights = weight_bytes > (8 << 20)
    weight_buffers = 1 if single_buffer_weights else 2
    # TODO(synk): if the resident bf16 weights exceed ~40 MiB on 64 MiB parts,
    # add an "arbitrary" grid axis tiling Hp/Cp instead of full residency.

    # VMEM budget: resident weights (x buffer count) + double-buffered
    # activation/output tiles + f32/bf16 intermediates, with headroom, clamped
    # to the physical VMEM capacity of this generation.
    act_tile_bytes = 2 * TM * (TEXT_DIM + IMAGE_DIM) * act_itemsize
    out_tile_bytes = 2 * TM * Cp * 4
    interm_bytes = (TM * Hp * (4 + 2) * 2 + TM * Cp * 4
                    + TM * (TEXT_DIM + IMAGE_DIM) * 2)
    vmem_needed = (weight_bytes * weight_buffers + act_tile_bytes
                   + out_tile_bytes + interm_bytes + (4 << 20))
    vmem_limit = int(max(min(vmem_needed, vmem_cap - (8 << 20)), 16 << 20))

    flops = 2 * Bp * Hp * (TEXT_DIM + IMAGE_DIM) + 2 * Bp * Hp * Cp * 2
    bytes_accessed = (Bp * (TEXT_DIM + IMAGE_DIM) * act_itemsize
                      + weight_bytes + Bp * Cp * 4)

    out = pl.pallas_call(
        _fusion_kernel,
        out_shape=jax.ShapeDtypeStruct((Bp, Cp), jnp.float32),
        grid=grid,
        in_specs=[
            pl.BlockSpec((TM, TEXT_DIM), lambda m: (m, 0)),   # text tile (f32)
            pl.BlockSpec((TM, IMAGE_DIM), lambda m: (m, 0)),  # image tile (f32)
            _resident_spec((TEXT_DIM, Hp), single_buffer_weights),   # Wt
            _resident_spec((1, Hp), single_buffer_weights),          # bt
            _resident_spec((IMAGE_DIM, Hp), single_buffer_weights),  # Wi
            _resident_spec((1, Hp), single_buffer_weights),          # bi
            _resident_spec((Hp, Cp), single_buffer_weights),         # Wc (text)
            _resident_spec((Hp, Cp), single_buffer_weights),         # Wc (image)
            _resident_spec((1, Cp), single_buffer_weights),          # bc
        ],
        out_specs=pl.BlockSpec((TM, Cp), lambda m: (m, 0)),
        compiler_params=pltpu.CompilerParams(
            dimension_semantics=("parallel",),
            vmem_limit_bytes=vmem_limit),
        cost_estimate=pl.CostEstimate(flops=int(flops), transcendentals=0,
                                      bytes_accessed=int(bytes_accessed)),
    )(t, i, wt_p, bt_p, wi_p, bi_p, wct_p, wci_p, bc_p)

    return out[:B, :C]


def reference_forward(text_feature, image_feature, params):
    t = jax.nn.relu(text_feature @ params["wt"] + params["bt"])
    i = jax.nn.relu(image_feature @ params["wi"] + params["bi"])
    fused = jnp.concatenate([t, i], axis=-1)
    return fused @ params["wc"] + params["bc"]


if __name__ == "__main__":
    B, hidden_dim, num_classes = 2, 32, 8

    key = jax.random.PRNGKey(0)
    k_text, k_img, k_params = jax.random.split(key, 3)

    text_feature = jax.random.normal(k_text, (B, TEXT_DIM), jnp.float32)
    image_feature = jax.random.normal(k_img, (B, IMAGE_DIM), jnp.float32)
    params = init_params(k_params, hidden_dim, num_classes)
    prepared = prepare_params(params)  # one-time weight cast/pad/split

    logits = simple_fusion_forward(text_feature, image_feature, prepared)
    logits = jax.block_until_ready(logits)

    ref = reference_forward(text_feature, image_feature, params)
    assert logits.shape == (B, num_classes)
    # bf16 weights/activations on the MXU (f32 accumulation): loose tolerance
    assert jnp.allclose(logits, ref, atol=3e-2, rtol=3e-2), \
        float(jnp.max(jnp.abs(logits - ref)))

    print("KERNEL_OK")
</pallas_src>

<mosaic_0001>
module attributes {stable_mosaic.version = 11 : i64} {
  func.func @_fusion_kernel(%arg0: i32, %arg1: memref<8x768xf32, #tpu.memory_space<vmem>>, %arg2: memref<8x2048xf32, #tpu.memory_space<vmem>>, %arg3: memref<768x128xbf16, #tpu.memory_space<vmem>>, %arg4: memref<1x128xf32, #tpu.memory_space<vmem>>, %arg5: memref<2048x128xbf16, #tpu.memory_space<vmem>>, %arg6: memref<1x128xf32, #tpu.memory_space<vmem>>, %arg7: memref<128x128xbf16, #tpu.memory_space<vmem>>, %arg8: memref<128x128xbf16, #tpu.memory_space<vmem>>, %arg9: memref<1x128xf32, #tpu.memory_space<vmem>>, %arg10: memref<8x128xf32, #tpu.memory_space<vmem>>) attributes {dimension_semantics = [#tpu.dimension_semantics<parallel>], iteration_bounds = array<i64: 1>, scalar_prefetch = 0 : i64, scratch_operands = 0 : i64, tpu.core_type = #tpu.core_type<tc>, window_params = [{transform_indices = @transform_0, window_bounds = array<i64: 8, 768>}, {transform_indices = @transform_1, window_bounds = array<i64: 8, 2048>}, {pipeline_mode = #tpu.pipeline_mode<synchronous>, transform_indices = @transform_2, window_bounds = array<i64: 768, 128>}, {pipeline_mode = #tpu.pipeline_mode<synchronous>, transform_indices = @transform_3, window_bounds = array<i64: 1, 128>}, {pipeline_mode = #tpu.pipeline_mode<synchronous>, transform_indices = @transform_4, window_bounds = array<i64: 2048, 128>}, {pipeline_mode = #tpu.pipeline_mode<synchronous>, transform_indices = @transform_5, window_bounds = array<i64: 1, 128>}, {pipeline_mode = #tpu.pipeline_mode<synchronous>, transform_indices = @transform_6, window_bounds = array<i64: 128, 128>}, {pipeline_mode = #tpu.pipeline_mode<synchronous>, transform_indices = @transform_7, window_bounds = array<i64: 128, 128>}, {pipeline_mode = #tpu.pipeline_mode<synchronous>, transform_indices = @transform_8, window_bounds = array<i64: 1, 128>}, {transform_indices = @transform_9, window_bounds = array<i64: 8, 128>}]} {
    %c0 = arith.constant 0 : index
    %c0_0 = arith.constant 0 : index
    %0 = vector.load %arg1[%c0, %c0_0] : memref<8x768xf32, #tpu.memory_space<vmem>>, vector<8x768xf32>
    %1 = arith.truncf %0 : vector<8x768xf32> to vector<8x768xbf16>
    %c0_1 = arith.constant 0 : index
    %c0_2 = arith.constant 0 : index
    %2 = vector.load %arg2[%c0_1, %c0_2] : memref<8x2048xf32, #tpu.memory_space<vmem>>, vector<8x2048xf32>
    %3 = arith.truncf %2 : vector<8x2048xf32> to vector<8x2048xbf16>
    %c0_3 = arith.constant 0 : index
    %c0_4 = arith.constant 0 : index
    %4 = vector.load %arg3[%c0_3, %c0_4] : memref<768x128xbf16, #tpu.memory_space<vmem>>, vector<768x128xbf16>
    %cst = arith.constant dense<0.000000e+00> : vector<8x128xf32>
    %5 = tpu.matmul %1, %4, %cst {dimension_numbers = #tpu.dot_dimension_numbers<[1], [0], [0], [1], [0, 0, 1, 1], [], []>} : vector<8x768xbf16>, vector<768x128xbf16>, vector<8x128xf32> -> vector<8x128xf32>
    %c0_5 = arith.constant 0 : index
    %c0_6 = arith.constant 0 : index
    %6 = vector.load %arg4[%c0_5, %c0_6] : memref<1x128xf32, #tpu.memory_space<vmem>>, vector<1x128xf32>
    %7 = vector.broadcast %6 : vector<1x128xf32> to vector<8x128xf32>
    %8 = arith.addf %5, %7 : vector<8x128xf32>
    %cst_7 = arith.constant 0.000000e+00 : f32
    %9 = vector.broadcast %cst_7 : f32 to vector<8x128xf32>
    %10 = arith.maximumf %8, %9 : vector<8x128xf32>
    %11 = arith.truncf %10 : vector<8x128xf32> to vector<8x128xbf16>
    %c0_8 = arith.constant 0 : index
    %c0_9 = arith.constant 0 : index
    %12 = vector.load %arg7[%c0_8, %c0_9] : memref<128x128xbf16, #tpu.memory_space<vmem>>, vector<128x128xbf16>
    %cst_10 = arith.constant dense<0.000000e+00> : vector<8x128xf32>
    %13 = tpu.matmul %11, %12, %cst_10 {dimension_numbers = #tpu.dot_dimension_numbers<[1], [0], [0], [1], [0, 0, 1, 1], [], []>} : vector<8x128xbf16>, vector<128x128xbf16>, vector<8x128xf32> -> vector<8x128xf32>
    %c0_11 = arith.constant 0 : index
    %c0_12 = arith.constant 0 : index
    %14 = vector.load %arg5[%c0_11, %c0_12] : memref<2048x128xbf16, #tpu.memory_space<vmem>>, vector<2048x128xbf16>
    %cst_13 = arith.constant dense<0.000000e+00> : vector<8x128xf32>
    %15 = tpu.matmul %3, %14, %cst_13 {dimension_numbers = #tpu.dot_dimension_numbers<[1], [0], [0], [1], [0, 0, 1, 1], [], []>} : vector<8x2048xbf16>, vector<2048x128xbf16>, vector<8x128xf32> -> vector<8x128xf32>
    %c0_14 = arith.constant 0 : index
    %c0_15 = arith.constant 0 : index
    %16 = vector.load %arg6[%c0_14, %c0_15] : memref<1x128xf32, #tpu.memory_space<vmem>>, vector<1x128xf32>
    %17 = vector.broadcast %16 : vector<1x128xf32> to vector<8x128xf32>
    %18 = arith.addf %15, %17 : vector<8x128xf32>
    %cst_16 = arith.constant 0.000000e+00 : f32
    %19 = vector.broadcast %cst_16 : f32 to vector<8x128xf32>
    %20 = arith.maximumf %18, %19 : vector<8x128xf32>
    %21 = arith.truncf %20 : vector<8x128xf32> to vector<8x128xbf16>
    %c0_17 = arith.constant 0 : index
    %c0_18 = arith.constant 0 : index
    %22 = vector.load %arg8[%c0_17, %c0_18] : memref<128x128xbf16, #tpu.memory_space<vmem>>, vector<128x128xbf16>
    %cst_19 = arith.constant dense<0.000000e+00> : vector<8x128xf32>
    %23 = tpu.matmul %21, %22, %cst_19 {dimension_numbers = #tpu.dot_dimension_numbers<[1], [0], [0], [1], [0, 0, 1, 1], [], []>} : vector<8x128xbf16>, vector<128x128xbf16>, vector<8x128xf32> -> vector<8x128xf32>
    %24 = arith.addf %13, %23 : vector<8x128xf32>
    %c0_20 = arith.constant 0 : index
    %c0_21 = arith.constant 0 : index
    %25 = vector.load %arg9[%c0_20, %c0_21] : memref<1x128xf32, #tpu.memory_space<vmem>>, vector<1x128xf32>
    %26 = vector.broadcast %25 : vector<1x128xf32> to vector<8x128xf32>
    %27 = arith.addf %24, %26 : vector<8x128xf32>
    %c0_22 = arith.constant 0 : index
    %c0_23 = arith.constant 0 : index
    %28 = vector.load %arg10[%c0_22, %c0_23] : memref<8x128xf32, #tpu.memory_space<vmem>>, vector<8x128xf32>
    tpu.vector_store %arg10[%c0_22, %c0_23], %27 {strides = array<i32>} : memref<8x128xf32, #tpu.memory_space<vmem>>, vector<8x128xf32>,
    return
  }
  func.func @transform_0(%arg0: i32) -> (i32, i32) {
    %c0_i32 = arith.constant 0 : i32
    %c0_i32_0 = arith.constant 0 : i32
    return %arg0, %c0_i32 : i32, i32
  }
  func.func @transform_1(%arg0: i32) -> (i32, i32) {
    %c0_i32 = arith.constant 0 : i32
    %c0_i32_0 = arith.constant 0 : i32
    return %arg0, %c0_i32 : i32, i32
  }
  func.func @transform_2(%arg0: i32) -> (i32, i32) {
    %c0_i32 = arith.constant 0 : i32
    %c0_i32_0 = arith.constant 0 : i32
    %c0_i32_1 = arith.constant 0 : i32
    return %c0_i32, %c0_i32_0 : i32, i32
  }
  func.func @transform_3(%arg0: i32) -> (i32, i32) {
    %c0_i32 = arith.constant 0 : i32
    %c0_i32_0 = arith.constant 0 : i32
    %c0_i32_1 = arith.constant 0 : i32
    return %c0_i32, %c0_i32_0 : i32, i32
  }
  func.func @transform_4(%arg0: i32) -> (i32, i32) {
    %c0_i32 = arith.constant 0 : i32
    %c0_i32_0 = arith.constant 0 : i32
    %c0_i32_1 = arith.constant 0 : i32
    return %c0_i32, %c0_i32_0 : i32, i32
  }
  func.func @transform_5(%arg0: i32) -> (i32, i32) {
    %c0_i32 = arith.constant 0 : i32
    %c0_i32_0 = arith.constant 0 : i32
    %c0_i32_1 = arith.constant 0 : i32
    return %c0_i32, %c0_i32_0 : i32, i32
  }
  func.func @transform_6(%arg0: i32) -> (i32, i32) {
    %c0_i32 = arith.constant 0 : i32
    %c0_i32_0 = arith.constant 0 : i32
    %c0_i32_1 = arith.constant 0 : i32
    return %c0_i32, %c0_i32_0 : i32, i32
  }
  func.func @transform_7(%arg0: i32) -> (i32, i32) {
    %c0_i32 = arith.constant 0 : i32
    %c0_i32_0 = arith.constant 0 : i32
    %c0_i32_1 = arith.constant 0 : i32
    return %c0_i32, %c0_i32_0 : i32, i32
  }
  func.func @transform_8(%arg0: i32) -> (i32, i32) {
    %c0_i32 = arith.constant 0 : i32
    %c0_i32_0 = arith.constant 0 : i32
    %c0_i32_1 = arith.constant 0 : i32
    return %c0_i32, %c0_i32_0 : i32, i32
  }
  func.func @transform_9(%arg0: i32) -> (i32, i32) {
    %c0_i32 = arith.constant 0 : i32
    %c0_i32_0 = arith.constant 0 : i32
    return %arg0, %c0_i32 : i32, i32
  }
}

</mosaic_0001>

<llo_original>
// kernel: tpu_custom_call.1
$region0: #{tpu_custom_call.1}
  #allocation0 [shape = 'u32[]', space=smem, size = 0x4, offset = 0x4, fixed_abs, tag = 'smem constant byte address 0x4 - core index']
  #allocation1 [shape = 'u32[144,128]{1,0:T(1,128)}', space=vmem, size = 0x12000, scoped, tag = 'internal scratch']
  %s0 = inlined_call_operand.hbm [shape: f32[8,768], index: 0, kind: input, shape index: {}]
  %s1 = inlined_call_operand.hbm [shape: f32[8,2048], index: 1, kind: input, shape index: {}]
  %s2 = inlined_call_operand.hbm [shape: bf16[768,128], index: 2, kind: input, shape index: {}]
  %s3 = inlined_call_operand.vmem [shape: f32[1,128], index: 3, kind: input, shape index: {}]
  %s4 = inlined_call_operand.hbm [shape: bf16[2048,128], index: 4, kind: input, shape index: {}]
  %s5 = inlined_call_operand.vmem [shape: f32[1,128], index: 5, kind: input, shape index: {}]
  %s6 = inlined_call_operand.hbm [shape: bf16[128,128], index: 6, kind: input, shape index: {}]
  %s7 = inlined_call_operand.hbm [shape: bf16[128,128], index: 7, kind: input, shape index: {}]
  %s8 = inlined_call_operand.vmem [shape: f32[1,128], index: 8, kind: input, shape index: {}]
  %s9 = inlined_call_operand.hbm [shape: f32[8,128], index: 9, kind: output, shape index: {}]
  %s10 = sld [smem:[#allocation0]]
  $region70: #{tpu_custom_call.1} parent=0
    _
  %s12 = ssub.s32 1, %s10
  %s13 = scalar_select 0, %s12, %s10
  $region1: #{tpu_custom_call.1} parent=0
    #allocation2 [shape = 'u8[24576]{0}', space=vmem, size = 0x6000, scoped, tag = 'input window, operand 0, single buffered']
    #allocation3 [shape = 's32[1]{0}', space=sflag, size = 0x4, scoped, tag = 'scoped memory for tpu_custom_call.1']
    #allocation4 [shape = 's32[1]{0}', space=sflag, size = 0x4, scoped, tag = 'scoped memory for tpu_custom_call.1']
    #allocation5 [shape = 'u8[65536]{0}', space=vmem, size = 0x10000, scoped, tag = 'input window, operand 1, single buffered']
    #allocation6 [shape = 's32[1]{0}', space=sflag, size = 0x4, scoped, tag = 'scoped memory for tpu_custom_call.1']
    #allocation7 [shape = 'u8[196608]{0}', space=vmem, size = 0x30000, scoped, tag = 'input window, operand 2, single buffered']
    #allocation8 [shape = 'u8[524288]{0}', space=vmem, size = 0x80000, scoped, tag = 'input window, operand 4, single buffered']
    #allocation9 [shape = 's32[1]{0}', space=sflag, size = 0x4, scoped, tag = 'scoped memory for tpu_custom_call.1']
    #allocation10 [shape = 'u8[32768]{0}', space=vmem, size = 0x8000, scoped, tag = 'input window, operand 6, single buffered']
    #allocation11 [shape = 'u8[32768]{0}', space=vmem, size = 0x8000, scoped, tag = 'input window, operand 7, single buffered']
    #allocation12 [shape = 's32[1]{0}', space=sflag, size = 0x4, scoped, tag = 'scoped memory for tpu_custom_call.1']
    #allocation13 [shape = 'u8[4096]{0}', space=vmem, size = 0x1000, scoped, tag = 'output window, operand 0, single buffered']
    %14 = vsyncpa [#allocation3], 0
    %15 = vsyncpa [#allocation6], 0
    %16 = vsyncpa [#allocation9], 0
    %17 = vsyncpa [#allocation12], 0
    %18 = vsyncpa [#allocation4], 0
    // Predicated region
    $region2: #{tpu_custom_call.1} parent=1 // pred_check
      _
    $region3: #{tpu_custom_call.1} parent=1 // pred_check_branch
      %20 = sbr.rel (0) target = $region5
    $region4: #{tpu_custom_call.1} parent=1 // pred_region
      %s22 = ssub.s32 768, 768
      %23 = vsyncadd [#allocation3], %s22
      %s25 = sshll.u32 [#allocation2], 4
      %s26 = int_to_ptr.vmem [resolvable:$true] %s25
      %28 = dma.hbm_to_vmem [thread:$0]  %s0, 768, %s26, [#allocation3]
    $region5: #{tpu_custom_call.1} parent=1 // pred_fallthru
      _
    // Predicated region
    $region6: #{tpu_custom_call.1} parent=1 // pred_check
      _
    $region7: #{tpu_custom_call.1} parent=1 // pred_check_branch
      %30 = sbr.rel (0) target = $region9
    $region8: #{tpu_custom_call.1} parent=1 // pred_region
      %s32 = ssub.s32 2048, 2048
      %33 = vsyncadd [#allocation6], %s32
      %s35 = sshll.u32 [#allocation5], 4
      %s36 = int_to_ptr.vmem [resolvable:$true] %s35
      %38 = dma.hbm_to_vmem [thread:$0]  %s1, 2048, %s36, [#allocation6]
    $region9: #{tpu_custom_call.1} parent=1 // pred_fallthru
      _
    // Predicated region
    $region10: #{tpu_custom_call.1} parent=1 // pred_check
      _
    $region11: #{tpu_custom_call.1} parent=1 // pred_check_branch
      %40 = sbr.rel (0) target = $region13
    $region12: #{tpu_custom_call.1} parent=1 // pred_region
      %s42 = ssub.s32 6144, 6144
      %43 = vsyncadd [#allocation6], %s42
      %s44 = sshll.u32 [#allocation7], 4
      %s45 = int_to_ptr.vmem [resolvable:$true] %s44
      %50 = dma.hbm_to_vmem [thread:$0]  %s2, 6144, %s45, [#allocation6], 64, 64, 4
    $region13: #{tpu_custom_call.1} parent=1 // pred_fallthru
      _
    // Predicated region
    $region14: #{tpu_custom_call.1} parent=1 // pred_check
      _
    $region15: #{tpu_custom_call.1} parent=1 // pred_check_branch
      %52 = sbr.rel (0) target = $region17
    $region16: #{tpu_custom_call.1} parent=1 // pred_region
      _
    $region17: #{tpu_custom_call.1} parent=1 // pred_fallthru
      _
    // Predicated region
    $region18: #{tpu_custom_call.1} parent=1 // pred_check
      _
    $region19: #{tpu_custom_call.1} parent=1 // pred_check_branch
      %54 = sbr.rel (0) target = $region21
    $region20: #{tpu_custom_call.1} parent=1 // pred_region
      %s56 = ssub.s32 16384, 16384
      %57 = vsyncadd [#allocation9], %s56
      %s58 = sshll.u32 [#allocation8], 4
      %s59 = int_to_ptr.vmem [resolvable:$true] %s58
      %64 = dma.hbm_to_vmem [thread:$0]  %s4, 16384, %s59, [#allocation9], 64, 64, 4
    $region21: #{tpu_custom_call.1} parent=1 // pred_fallthru
      _
    // Predicated region
    $region22: #{tpu_custom_call.1} parent=1 // pred_check
      _
    $region23: #{tpu_custom_call.1} parent=1 // pred_check_branch
      %66 = sbr.rel (0) target = $region25
    $region24: #{tpu_custom_call.1} parent=1 // pred_region
      _
    $region25: #{tpu_custom_call.1} parent=1 // pred_fallthru
      _
    // Predicated region
    $region26: #{tpu_custom_call.1} parent=1 // pred_check
      _
    $region27: #{tpu_custom_call.1} parent=1 // pred_check_branch
      %68 = sbr.rel (0) target = $region29
    $region28: #{tpu_custom_call.1} parent=1 // pred_region
      %s70 = ssub.s32 1024, 1024
      %71 = vsyncadd [#allocation9], %s70
      %s72 = sshll.u32 [#allocation10], 4
      %s73 = int_to_ptr.vmem [resolvable:$true] %s72
      %78 = dma.hbm_to_vmem [thread:$0]  %s6, 1024, %s73, [#allocation9], 64, 64, 4
    $region29: #{tpu_custom_call.1} parent=1 // pred_fallthru
      _
    // Predicated region
    $region30: #{tpu_custom_call.1} parent=1 // pred_check
      _
    $region31: #{tpu_custom_call.1} parent=1 // pred_check_branch
      %80 = sbr.rel (0) target = $region33
    $region32: #{tpu_custom_call.1} parent=1 // pred_region
      %s82 = ssub.s32 1024, 1024
      %83 = vsyncadd [#allocation12], %s82
      %s84 = sshll.u32 [#allocation11], 4
      %s85 = int_to_ptr.vmem [resolvable:$true] %s84
      %90 = dma.hbm_to_vmem [thread:$0]  %s7, 1024, %s85, [#allocation12], 64, 64, 4
    $region33: #{tpu_custom_call.1} parent=1 // pred_fallthru
      _
    // Predicated region
    $region34: #{tpu_custom_call.1} parent=1 // pred_check
      _
    $region35: #{tpu_custom_call.1} parent=1 // pred_check_branch
      %92 = sbr.rel (0) target = $region37
    $region36: #{tpu_custom_call.1} parent=1 // pred_region
      _
    $region37: #{tpu_custom_call.1} parent=1 // pred_fallthru
      _
    // Predicated region
    $region38: #{tpu_custom_call.1} parent=1 // pred_check
      _
    $region39: #{tpu_custom_call.1} parent=1 // pred_check_branch
      %94 = sbr.rel (0) target = $region41
    $region40: #{tpu_custom_call.1} parent=1 // pred_region
      %95 = dma.done [#allocation3], 768
    $region41: #{tpu_custom_call.1} parent=1 // pred_fallthru
      _
    // Predicated region
    $region42: #{tpu_custom_call.1} parent=1 // pred_check
      _
    $region43: #{tpu_custom_call.1} parent=1 // pred_check_branch
      %97 = sbr.rel (0) target = $region45
    $region44: #{tpu_custom_call.1} parent=1 // pred_region
      %98 = dma.done [#allocation6], 2048
    $region45: #{tpu_custom_call.1} parent=1 // pred_fallthru
      _
    // Predicated region
    $region46: #{tpu_custom_call.1} parent=1 // pred_check
      _
    $region47: #{tpu_custom_call.1} parent=1 // pred_check_branch
      %100 = sbr.rel (0) target = $region49
    $region48: #{tpu_custom_call.1} parent=1 // pred_region
      %101 = dma.done [#allocation6], 6144
    $region49: #{tpu_custom_call.1} parent=1 // pred_fallthru
      _
    // Predicated region
    $region50: #{tpu_custom_call.1} parent=1 // pred_check
      _
    $region51: #{tpu_custom_call.1} parent=1 // pred_check_branch
      %103 = sbr.rel (0) target = $region53
    $region52: #{tpu_custom_call.1} parent=1 // pred_region
      %104 = dma.done [#allocation9], 16384
    $region53: #{tpu_custom_call.1} parent=1 // pred_fallthru
      _
    // Predicated region
    $region54: #{tpu_custom_call.1} parent=1 // pred_check
      _
    $region55: #{tpu_custom_call.1} parent=1 // pred_check_branch
      %106 = sbr.rel (0) target = $region57
    $region56: #{tpu_custom_call.1} parent=1 // pred_region
      %107 = dma.done [#allocation9], 1024
    $region57: #{tpu_custom_call.1} parent=1 // pred_fallthru
      _
    // Predicated region
    $region58: #{tpu_custom_call.1} parent=1 // pred_check
      _
    $region59: #{tpu_custom_call.1} parent=1 // pred_check_branch
      %109 = sbr.rel (0) target = $region61
    $region60: #{tpu_custom_call.1} parent=1 // pred_region
      %110 = dma.done [#allocation12], 1024
    $region61: #{tpu_custom_call.1} parent=1 // pred_fallthru
      _
    %v112 = vld [vmem:[#allocation2] sm:$0xff]
    %v113 = vld [vmem:[#allocation2 + $0x8] sm:$0xff]
    %v114 = vld [vmem:[#allocation2 + $0x10] sm:$0xff]
    %v115 = vld [vmem:[#allocation2 + $0x18] sm:$0xff]
    %v116 = vld [vmem:[#allocation2 + $0x20] sm:$0xff]
    %v117 = vld [vmem:[#allocation2 + $0x28] sm:$0xff]
    %v118 = vpack.c.bf16 %v112, %v112
    %v119 = vpack.c.bf16 %v113, %v113
    %v120 = vpack.c.bf16 %v114, %v114
    %v121 = vpack.c.bf16 %v115, %v115
    %v122 = vpack.c.bf16 %v116, %v116
    %v123 = vpack.c.bf16 %v117, %v117
    %v124 = vld [vmem:[#allocation5] sm:$0xff]
    %v125 = vld [vmem:[#allocation5 + $0x8] sm:$0xff]
    %v126 = vld [vmem:[#allocation5 + $0x10] sm:$0xff]
    %v127 = vld [vmem:[#allocation5 + $0x18] sm:$0xff]
    %v128 = vld [vmem:[#allocation5 + $0x20] sm:$0xff]
    %v129 = vld [vmem:[#allocation5 + $0x28] sm:$0xff]
    %v130 = vld [vmem:[#allocation5 + $0x30] sm:$0xff]
    %v131 = vld [vmem:[#allocation5 + $0x38] sm:$0xff]
    %v132 = vld [vmem:[#allocation5 + $0x40] sm:$0xff]
    %v133 = vld [vmem:[#allocation5 + $0x48] sm:$0xff]
    %v134 = vld [vmem:[#allocation5 + $0x50] sm:$0xff]
    %v135 = vld [vmem:[#allocation5 + $0x58] sm:$0xff]
    %v136 = vld [vmem:[#allocation5 + $0x60] sm:$0xff]
    %v137 = vld [vmem:[#allocation5 + $0x68] sm:$0xff]
    %v138 = vld [vmem:[#allocation5 + $0x70] sm:$0xff]
    %v139 = vld [vmem:[#allocation5 + $0x78] sm:$0xff]
    %v140 = vpack.c.bf16 %v124, %v124
    %v141 = vpack.c.bf16 %v125, %v125
    %v142 = vpack.c.bf16 %v126, %v126
    %v143 = vpack.c.bf16 %v127, %v127
    %v144 = vpack.c.bf16 %v128, %v128
    %v145 = vpack.c.bf16 %v129, %v129
    %v146 = vpack.c.bf16 %v130, %v130
    %v147 = vpack.c.bf16 %v131, %v131
    %v148 = vpack.c.bf16 %v132, %v132
    %v149 = vpack.c.bf16 %v133, %v133
    %v150 = vpack.c.bf16 %v134, %v134
    %v151 = vpack.c.bf16 %v135, %v135
    %v152 = vpack.c.bf16 %v136, %v136
    %v153 = vpack.c.bf16 %v137, %v137
    %v154 = vpack.c.bf16 %v138, %v138
    %v155 = vpack.c.bf16 %v139, %v139
    %v156 = vld [vmem:[#allocation7] sm:$0xf]
    %v157 = vld [vmem:[#allocation7 + $0x4] sm:$0xf]
    %v158 = vld [vmem:[#allocation7 + $0x8] sm:$0xf]
    %v159 = vld [vmem:[#allocation7 + $0xc] sm:$0xf]
    %v160 = vld [vmem:[#allocation7 + $0x10] sm:$0xf]
    %v161 = vld [vmem:[#allocation7 + $0x14] sm:$0xf]
    %v162 = vld [vmem:[#allocation7 + $0x18] sm:$0xf]
    %v163 = vld [vmem:[#allocation7 + $0x1c] sm:$0xf]
    %v164 = vld [vmem:[#allocation7 + $0x20] sm:$0xf]
    %v165 = vld [vmem:[#allocation7 + $0x24] sm:$0xf]
    %v166 = vld [vmem:[#allocation7 + $0x28] sm:$0xf]
    %v167 = vld [vmem:[#allocation7 + $0x2c] sm:$0xf]
    %v168 = vld [vmem:[#allocation7 + $0x30] sm:$0xf]
    %v169 = vld [vmem:[#allocation7 + $0x34] sm:$0xf]
    %v170 = vld [vmem:[#allocation7 + $0x38] sm:$0xf]
    %v171 = vld [vmem:[#allocation7 + $0x3c] sm:$0xf]
    %v172 = vld [vmem:[#allocation7 + $0x40] sm:$0xf]
    %v173 = vld [vmem:[#allocation7 + $0x44] sm:$0xf]
    %v174 = vld [vmem:[#allocation7 + $0x48] sm:$0xf]
    %v175 = vld [vmem:[#allocation7 + $0x4c] sm:$0xf]
    %v176 = vld [vmem:[#allocation7 + $0x50] sm:$0xf]
    %v177 = vld [vmem:[#allocation7 + $0x54] sm:$0xf]
    %v178 = vld [vmem:[#allocation7 + $0x58] sm:$0xf]
    %v179 = vld [vmem:[#allocation7 + $0x5c] sm:$0xf]
    %v180 = vld [vmem:[#allocation7 + $0x60] sm:$0xf]
    %v181 = vld [vmem:[#allocation7 + $0x64] sm:$0xf]
    %v182 = vld [vmem:[#allocation7 + $0x68] sm:$0xf]
    %v183 = vld [vmem:[#allocation7 + $0x6c] sm:$0xf]
    %v184 = vld [vmem:[#allocation7 + $0x70] sm:$0xf]
    %v185 = vld [vmem:[#allocation7 + $0x74] sm:$0xf]
    %v186 = vld [vmem:[#allocation7 + $0x78] sm:$0xf]
    %v187 = vld [vmem:[#allocation7 + $0x7c] sm:$0xf]
    %v188 = vld [vmem:[#allocation7 + $0x80] sm:$0xf]
    %v189 = vld [vmem:[#allocation7 + $0x84] sm:$0xf]
    %v190 = vld [vmem:[#allocation7 + $0x88] sm:$0xf]
    %v191 = vld [vmem:[#allocation7 + $0x8c] sm:$0xf]
    %v192 = vld [vmem:[#allocation7 + $0x90] sm:$0xf]
    %v193 = vld [vmem:[#allocation7 + $0x94] sm:$0xf]
    %v194 = vld [vmem:[#allocation7 + $0x98] sm:$0xf]
    %v195 = vld [vmem:[#allocation7 + $0x9c] sm:$0xf]
    %v196 = vld [vmem:[#allocation7 + $0xa0] sm:$0xf]
    %v197 = vld [vmem:[#allocation7 + $0xa4] sm:$0xf]
    %v198 = vld [vmem:[#allocation7 + $0xa8] sm:$0xf]
    %v199 = vld [vmem:[#allocation7 + $0xac] sm:$0xf]
    %v200 = vld [vmem:[#allocation7 + $0xb0] sm:$0xf]
    %v201 = vld [vmem:[#allocation7 + $0xb4] sm:$0xf]
    %v202 = vld [vmem:[#allocation7 + $0xb8] sm:$0xf]
    %v203 = vld [vmem:[#allocation7 + $0xbc] sm:$0xf]
    %v204 = vld [vmem:[#allocation7 + $0xc0] sm:$0xf]
    %v205 = vld [vmem:[#allocation7 + $0xc4] sm:$0xf]
    %v206 = vld [vmem:[#allocation7 + $0xc8] sm:$0xf]
    %v207 = vld [vmem:[#allocation7 + $0xcc] sm:$0xf]
    %v208 = vld [vmem:[#allocation7 + $0xd0] sm:$0xf]
    %v209 = vld [vmem:[#allocation7 + $0xd4] sm:$0xf]
    %v210 = vld [vmem:[#allocation7 + $0xd8] sm:$0xf]
    %v211 = vld [vmem:[#allocation7 + $0xdc] sm:$0xf]
    %v212 = vld [vmem:[#allocation7 + $0xe0] sm:$0xf]
    %v213 = vld [vmem:[#allocation7 + $0xe4] sm:$0xf]
    %v214 = vld [vmem:[#allocation7 + $0xe8] sm:$0xf]
    %v215 = vld [vmem:[#allocation7 + $0xec] sm:$0xf]
    %v216 = vld [vmem:[#allocation7 + $0xf0] sm:$0xf]
    %v217 = vld [vmem:[#allocation7 + $0xf4] sm:$0xf]
    %v218 = vld [vmem:[#allocation7 + $0xf8] sm:$0xf]
    %v219 = vld [vmem:[#allocation7 + $0xfc] sm:$0xf]
    %v220 = vld [vmem:[#allocation7 + $0x100] sm:$0xf]
    %v221 = vld [vmem:[#allocation7 + $0x104] sm:$0xf]
    %v222 = vld [vmem:[#allocation7 + $0x108] sm:$0xf]
    %v223 = vld [vmem:[#allocation7 + $0x10c] sm:$0xf]
    %v224 = vld [vmem:[#allocation7 + $0x110] sm:$0xf]
    %v225 = vld [vmem:[#allocation7 + $0x114] sm:$0xf]
    %v226 = vld [vmem:[#allocation7 + $0x118] sm:$0xf]
    %v227 = vld [vmem:[#allocation7 + $0x11c] sm:$0xf]
    %v228 = vld [vmem:[#allocation7 + $0x120] sm:$0xf]
    %v229 = vld [vmem:[#allocation7 + $0x124] sm:$0xf]
    %v230 = vld [vmem:[#allocation7 + $0x128] sm:$0xf]
    %v231 = vld [vmem:[#allocation7 + $0x12c] sm:$0xf]
    %v232 = vld [vmem:[#allocation7 + $0x130] sm:$0xf]
    %v233 = vld [vmem:[#allocation7 + $0x134] sm:$0xf]
    %v234 = vld [vmem:[#allocation7 + $0x138] sm:$0xf]
    %v235 = vld [vmem:[#allocation7 + $0x13c] sm:$0xf]
    %v236 = vld [vmem:[#allocation7 + $0x140] sm:$0xf]
    %v237 = vld [vmem:[#allocation7 + $0x144] sm:$0xf]
    %v238 = vld [vmem:[#allocation7 + $0x148] sm:$0xf]
    %v239 = vld [vmem:[#allocation7 + $0x14c] sm:$0xf]
    %v240 = vld [vmem:[#allocation7 + $0x150] sm:$0xf]
    %v241 = vld [vmem:[#allocation7 + $0x154] sm:$0xf]
    %v242 = vld [vmem:[#allocation7 + $0x158] sm:$0xf]
    %v243 = vld [vmem:[#allocation7 + $0x15c] sm:$0xf]
    %v244 = vld [vmem:[#allocation7 + $0x160] sm:$0xf]
    %v245 = vld [vmem:[#allocation7 + $0x164] sm:$0xf]
    %v246 = vld [vmem:[#allocation7 + $0x168] sm:$0xf]
    %v247 = vld [vmem:[#allocation7 + $0x16c] sm:$0xf]
    %v248 = vld [vmem:[#allocation7 + $0x170] sm:$0xf]
    %v249 = vld [vmem:[#allocation7 + $0x174] sm:$0xf]
    %v250 = vld [vmem:[#allocation7 + $0x178] sm:$0xf]
    %v251 = vld [vmem:[#allocation7 + $0x17c] sm:$0xf]
    %v252 = vld [vmem:[%s3] sm:$0x1]
    %v254 = vlaneseq
    %v255 = vshrl.u32 %v254, 7
    %v256 = vsub.s32 0, %v255
    %v257 = vrot.slane %v252, %v256
    %v355 = vunpack.c.l.b16 %v156
    %v356 = vunpack.c.l.b16 %v157
    %v357 = vunpack.c.l.b16 %v158
    %v358 = vunpack.c.l.b16 %v159
    %v359 = vunpack.c.l.b16 %v160
    %v360 = vunpack.c.l.b16 %v161
    %v361 = vunpack.c.l.b16 %v162
    %v362 = vunpack.c.l.b16 %v163
    %v363 = vunpack.c.l.b16 %v164
    %v364 = vunpack.c.l.b16 %v165
    %v365 = vunpack.c.l.b16 %v166
    %v366 = vunpack.c.l.b16 %v167
    %v367 = vunpack.c.l.b16 %v168
    %v368 = vunpack.c.l.b16 %v169
    %v369 = vunpack.c.l.b16 %v170
    %v370 = vunpack.c.l.b16 %v171
    %v371 = vunpack.c.l.b16 %v172
    %v372 = vunpack.c.l.b16 %v173
    %v373 = vunpack.c.l.b16 %v174
    %v374 = vunpack.c.l.b16 %v175
    %v375 = vunpack.c.l.b16 %v176
    %v376 = vunpack.c.l.b16 %v177
    %v377 = vunpack.c.l.b16 %v178
    %v378 = vunpack.c.l.b16 %v179
    %v379 = vunpack.c.l.b16 %v180
    %v380 = vunpack.c.l.b16 %v181
    %v381 = vunpack.c.l.b16 %v182
    %v382 = vunpack.c.l.b16 %v183
    %v383 = vunpack.c.l.b16 %v184
    %v384 = vunpack.c.l.b16 %v185
    %v385 = vunpack.c.l.b16 %v186
    %v386 = vunpack.c.l.b16 %v187
    %v387 = vunpack.c.l.b16 %v188
    %v388 = vunpack.c.l.b16 %v189
    %v389 = vunpack.c.l.b16 %v190
    %v390 = vunpack.c.l.b16 %v191
    %v391 = vunpack.c.l.b16 %v192
    %v392 = vunpack.c.l.b16 %v193
    %v393 = vunpack.c.l.b16 %v194
    %v394 = vunpack.c.l.b16 %v195
    %v395 = vunpack.c.l.b16 %v196
    %v396 = vunpack.c.l.b16 %v197
    %v397 = vunpack.c.l.b16 %v198
    %v398 = vunpack.c.l.b16 %v199
    %v399 = vunpack.c.l.b16 %v200
    %v400 = vunpack.c.l.b16 %v201
    %v401 = vunpack.c.l.b16 %v202
    %v402 = vunpack.c.l.b16 %v203
    %v403 = vunpack.c.l.b16 %v204
    %v404 = vunpack.c.l.b16 %v205
    %v405 = vunpack.c.l.b16 %v206
    %v406 = vunpack.c.l.b16 %v207
    %v407 = vunpack.c.l.b16 %v208
    %v408 = vunpack.c.l.b16 %v209
    %v409 = vunpack.c.l.b16 %v210
    %v410 = vunpack.c.l.b16 %v211
    %v411 = vunpack.c.l.b16 %v212
    %v412 = vunpack.c.l.b16 %v213
    %v413 = vunpack.c.l.b16 %v214
    %v414 = vunpack.c.l.b16 %v215
    %v415 = vunpack.c.l.b16 %v216
    %v416 = vunpack.c.l.b16 %v217
    %v417 = vunpack.c.l.b16 %v218
    %v418 = vunpack.c.l.b16 %v219
    %v419 = vunpack.c.l.b16 %v220
    %v420 = vunpack.c.l.b16 %v221
    %v421 = vunpack.c.l.b16 %v222
    %v422 = vunpack.c.l.b16 %v223
    %v423 = vunpack.c.l.b16 %v224
    %v424 = vunpack.c.l.b16 %v225
    %v425 = vunpack.c.l.b16 %v226
    %v426 = vunpack.c.l.b16 %v227
    %v427 = vunpack.c.l.b16 %v228
    %v428 = vunpack.c.l.b16 %v229
    %v429 = vunpack.c.l.b16 %v230
    %v430 = vunpack.c.l.b16 %v231
    %v431 = vunpack.c.l.b16 %v232
    %v432 = vunpack.c.l.b16 %v233
    %v433 = vunpack.c.l.b16 %v234
    %v434 = vunpack.c.l.b16 %v235
    %v435 = vunpack.c.l.b16 %v236
    %v436 = vunpack.c.l.b16 %v237
    %v437 = vunpack.c.l.b16 %v238
    %v438 = vunpack.c.l.b16 %v239
    %v439 = vunpack.c.l.b16 %v240
    %v440 = vunpack.c.l.b16 %v241
    %v441 = vunpack.c.l.b16 %v242
    %v442 = vunpack.c.l.b16 %v243
    %v443 = vunpack.c.l.b16 %v244
    %v444 = vunpack.c.l.b16 %v245
    %v445 = vunpack.c.l.b16 %v246
    %v446 = vunpack.c.l.b16 %v247
    %v447 = vunpack.c.l.b16 %v248
    %v448 = vunpack.c.l.b16 %v249
    %v449 = vunpack.c.l.b16 %v250
    %v450 = vunpack.c.l.b16 %v251
    %v451 = vpack.c.b16 %v356, %v355
    %v452 = vpack.c.b16 %v358, %v357
    %v453 = vpack.c.b16 %v360, %v359
    %v454 = vpack.c.b16 %v362, %v361
    %v455 = vpack.c.b16 %v364, %v363
    %v456 = vpack.c.b16 %v366, %v365
    %v457 = vpack.c.b16 %v368, %v367
    %v458 = vpack.c.b16 %v370, %v369
    %v459 = vpack.c.b16 %v372, %v371
    %v460 = vpack.c.b16 %v374, %v373
    %v461 = vpack.c.b16 %v376, %v375
    %v462 = vpack.c.b16 %v378, %v377
    %v463 = vpack.c.b16 %v380, %v379
    %v464 = vpack.c.b16 %v382, %v381
    %v465 = vpack.c.b16 %v384, %v383
    %v466 = vpack.c.b16 %v386, %v385
    %v467 = vpack.c.b16 %v388, %v387
    %v468 = vpack.c.b16 %v390, %v389
    %v469 = vpack.c.b16 %v392, %v391
    %v470 = vpack.c.b16 %v394, %v393
    %v471 = vpack.c.b16 %v396, %v395
    %v472 = vpack.c.b16 %v398, %v397
    %v473 = vpack.c.b16 %v400, %v399
    %v474 = vpack.c.b16 %v402, %v401
    %v475 = vpack.c.b16 %v404, %v403
    %v476 = vpack.c.b16 %v406, %v405
    %v477 = vpack.c.b16 %v408, %v407
    %v478 = vpack.c.b16 %v410, %v409
    %v479 = vpack.c.b16 %v412, %v411
    %v480 = vpack.c.b16 %v414, %v413
    %v481 = vpack.c.b16 %v416, %v415
    %v482 = vpack.c.b16 %v418, %v417
    %v483 = vpack.c.b16 %v420, %v419
    %v484 = vpack.c.b16 %v422, %v421
    %v485 = vpack.c.b16 %v424, %v423
    %v486 = vpack.c.b16 %v426, %v425
    %v487 = vpack.c.b16 %v428, %v427
    %v488 = vpack.c.b16 %v430, %v429
    %v489 = vpack.c.b16 %v432, %v431
    %v490 = vpack.c.b16 %v434, %v433
    %v491 = vpack.c.b16 %v436, %v435
    %v492 = vpack.c.b16 %v438, %v437
    %v493 = vpack.c.b16 %v440, %v439
    %v494 = vpack.c.b16 %v442, %v441
    %v495 = vpack.c.b16 %v444, %v443
    %v496 = vpack.c.b16 %v446, %v445
    %v497 = vpack.c.b16 %v448, %v447
    %v498 = vpack.c.b16 %v450, %v449
    %547 = vmatprep.subr.bf16.mxu0 0
    %548 = vmatpush1.bf16.msra.mxu0 %v458
    %549 = vmatprep.subr.bf16.mxu0 0
    %550 = vmatpush1.bf16.msra.mxu0 %v457
    %551 = vmatprep.subr.bf16.mxu0 0
    %552 = vmatpush1.bf16.msra.mxu0 %v456
    %553 = vmatprep.subr.bf16.mxu0 0
    %554 = vmatpush1.bf16.msra.mxu0 %v455
    %555 = vmatprep.subr.bf16.mxu0 0
    %556 = vmatpush1.bf16.msra.mxu0 %v454
    %557 = vmatprep.subr.bf16.mxu0 0
    %558 = vmatpush1.bf16.msra.mxu0 %v453
    %559 = vmatprep.subr.bf16.mxu0 0
    %560 = vmatpush1.bf16.msra.mxu0 %v452
    %561 = vmatprep.subr.bf16.mxu0 0
    %562 = vmatpush1.bf16.msra.mxu0 %v451
    %563 = vmatprep.subr.bf16.mxu0 0
    %564 = vmatpush2.bf16.msra.mxu0 %v466
    %565 = vmatprep.subr.bf16.mxu0 0
    %566 = vmatpush2.bf16.msra.mxu0 %v465
    %567 = vmatprep.subr.bf16.mxu0 0
    %568 = vmatpush2.bf16.msra.mxu0 %v464
    %569 = vmatprep.subr.bf16.mxu0 0
    %570 = vmatpush2.bf16.msra.mxu0 %v463
    %571 = vmatprep.subr.bf16.mxu0 0
    %572 = vmatpush2.bf16.msra.mxu0 %v462
    %573 = vmatprep.subr.bf16.mxu0 0
    %574 = vmatpush2.bf16.msra.mxu0 %v461
    %575 = vmatprep.subr.bf16.mxu0 0
    %576 = vmatpush2.bf16.msra.mxu0 %v460
    %577 = vmatprep.subr.bf16.mxu0 0
    %578 = vmatpush2.bf16.msra.mxu0 %v459
    %579 = vmatprep.mubr.bf16.mxu0 %v119
    %580 = vmatmul.mubr.bf16.gmra.mxu0 %v118
    %v581 = vpop.f32.mrf.mxu0
    %v582 = vadd.f32 %v257, %v581
    %v583 = vpop.f32.mrf.mxu0
    %v584 = vpop.f32.mrf.mxu0
    %v585 = vpop.f32.mrf.mxu0
    %586 = vdwg.mxu0
    %587 = vmatprep.subr.bf16.mxu0 0
    %588 = vmatpush1.bf16.msra.mxu0 %v474
    %589 = vmatprep.subr.bf16.mxu0 0
    %590 = vmatpush1.bf16.msra.mxu0 %v473
    %591 = vmatprep.subr.bf16.mxu0 0
    %592 = vmatpush1.bf16.msra.mxu0 %v472
    %593 = vmatprep.subr.bf16.mxu0 0
    %594 = vmatpush1.bf16.msra.mxu0 %v471
    %595 = vmatprep.subr.bf16.mxu0 0
    %596 = vmatpush1.bf16.msra.mxu0 %v470
    %597 = vmatprep.subr.bf16.mxu0 0
    %598 = vmatpush1.bf16.msra.mxu0 %v469
    %599 = vmatprep.subr.bf16.mxu0 0
    %600 = vmatpush1.bf16.msra.mxu0 %v468
    %601 = vmatprep.subr.bf16.mxu0 0
    %602 = vmatpush1.bf16.msra.mxu0 %v467
    %603 = vmatprep.subr.bf16.mxu0 0
    %604 = vmatpush2.bf16.msra.mxu0 %v482
    %605 = vmatprep.subr.bf16.mxu0 0
    %606 = vmatpush2.bf16.msra.mxu0 %v481
    %607 = vmatprep.subr.bf16.mxu0 0
    %608 = vmatpush2.bf16.msra.mxu0 %v480
    %609 = vmatprep.subr.bf16.mxu0 0
    %610 = vmatpush2.bf16.msra.mxu0 %v479
    %611 = vmatprep.subr.bf16.mxu0 0
    %612 = vmatpush2.bf16.msra.mxu0 %v478
    %613 = vmatprep.subr.bf16.mxu0 0
    %614 = vmatpush2.bf16.msra.mxu0 %v477
    %615 = vmatprep.subr.bf16.mxu0 0
    %616 = vmatpush2.bf16.msra.mxu0 %v476
    %617 = vmatprep.subr.bf16.mxu0 0
    %618 = vmatpush2.bf16.msra.mxu0 %v475
    %619 = vmatprep.mubr.bf16.mxu0 %v121
    %620 = vmatmul.mubr.bf16.gmra.mxu0 %v120
    %v621 = vpop.f32.mrf.mxu0
    %v622 = vadd.f32 %v582, %v621
    %v623 = vpop.f32.mrf.mxu0
    %v624 = vpop.f32.mrf.mxu0
    %v625 = vpop.f32.mrf.mxu0
    %626 = vdwg.mxu0
    %627 = vmatprep.subr.bf16.mxu0 0
    %628 = vmatpush1.bf16.msra.mxu0 %v490
    %629 = vmatprep.subr.bf16.mxu0 0
    %630 = vmatpush1.bf16.msra.mxu0 %v489
    %631 = vmatprep.subr.bf16.mxu0 0
    %632 = vmatpush1.bf16.msra.mxu0 %v488
    %633 = vmatprep.subr.bf16.mxu0 0
    %634 = vmatpush1.bf16.msra.mxu0 %v487
    %635 = vmatprep.subr.bf16.mxu0 0
    %636 = vmatpush1.bf16.msra.mxu0 %v486
    %637 = vmatprep.subr.bf16.mxu0 0
    %638 = vmatpush1.bf16.msra.mxu0 %v485
    %639 = vmatprep.subr.bf16.mxu0 0
    %640 = vmatpush1.bf16.msra.mxu0 %v484
    %641 = vmatprep.subr.bf16.mxu0 0
    %642 = vmatpush1.bf16.msra.mxu0 %v483
    %643 = vmatprep.subr.bf16.mxu0 0
    %644 = vmatpush2.bf16.msra.mxu0 %v498
    %645 = vmatprep.subr.bf16.mxu0 0
    %646 = vmatpush2.bf16.msra.mxu0 %v497
    %647 = vmatprep.subr.bf16.mxu0 0
    %648 = vmatpush2.bf16.msra.mxu0 %v496
    %649 = vmatprep.subr.bf16.mxu0 0
    %650 = vmatpush2.bf16.msra.mxu0 %v495
    %651 = vmatprep.subr.bf16.mxu0 0
    %652 = vmatpush2.bf16.msra.mxu0 %v494
    %653 = vmatprep.subr.bf16.mxu0 0
    %654 = vmatpush2.bf16.msra.mxu0 %v493
    %655 = vmatprep.subr.bf16.mxu0 0
    %656 = vmatpush2.bf16.msra.mxu0 %v492
    %657 = vmatprep.subr.bf16.mxu0 0
    %658 = vmatpush2.bf16.msra.mxu0 %v491
    %659 = vmatprep.mubr.bf16.mxu0 %v123
    %660 = vmatmul.mubr.bf16.gmra.mxu0 %v122
    %v661 = vpop.f32.mrf.mxu0
    %v662 = vadd.f32 %v622, %v661
    %v663 = vpop.f32.mrf.mxu0
    %v664 = vpop.f32.mrf.mxu0
    %v665 = vpop.f32.mrf.mxu0
    %666 = vdwg.mxu0
    %v667 = vmax.f32 %v662, 0.0
    %v668 = vpack.c.bf16 %v667, %v667
    %v669 = vld [vmem:[#allocation10] sm:$0xf]
    %v670 = vld [vmem:[#allocation10 + $0x4] sm:$0xf]
    %v671 = vld [vmem:[#allocation10 + $0x8] sm:$0xf]
    %v672 = vld [vmem:[#allocation10 + $0xc] sm:$0xf]
    %v673 = vld [vmem:[#allocation10 + $0x10] sm:$0xf]
    %v674 = vld [vmem:[#allocation10 + $0x14] sm:$0xf]
    %v675 = vld [vmem:[#allocation10 + $0x18] sm:$0xf]
    %v676 = vld [vmem:[#allocation10 + $0x1c] sm:$0xf]
    %v677 = vld [vmem:[#allocation10 + $0x20] sm:$0xf]
    %v678 = vld [vmem:[#allocation10 + $0x24] sm:$0xf]
    %v679 = vld [vmem:[#allocation10 + $0x28] sm:$0xf]
    %v680 = vld [vmem:[#allocation10 + $0x2c] sm:$0xf]
    %v681 = vld [vmem:[#allocation10 + $0x30] sm:$0xf]
    %v682 = vld [vmem:[#allocation10 + $0x34] sm:$0xf]
    %v683 = vld [vmem:[#allocation10 + $0x38] sm:$0xf]
    %v684 = vld [vmem:[#allocation10 + $0x3c] sm:$0xf]
    %v685 = vld [vmem:[#allocation8] sm:$0xf]
    %v686 = vld [vmem:[#allocation8 + $0x4] sm:$0xf]
    %v687 = vld [vmem:[#allocation8 + $0x8] sm:$0xf]
    %v688 = vld [vmem:[#allocation8 + $0xc] sm:$0xf]
    %v689 = vld [vmem:[#allocation8 + $0x10] sm:$0xf]
    %v690 = vld [vmem:[#allocation8 + $0x14] sm:$0xf]
    %v691 = vld [vmem:[#allocation8 + $0x18] sm:$0xf]
    %v692 = vld [vmem:[#allocation8 + $0x1c] sm:$0xf]
    %v693 = vld [vmem:[#allocation8 + $0x20] sm:$0xf]
    %v694 = vld [vmem:[#allocation8 + $0x24] sm:$0xf]
    %v695 = vld [vmem:[#allocation8 + $0x28] sm:$0xf]
    %v696 = vld [vmem:[#allocation8 + $0x2c] sm:$0xf]
    %v697 = vld [vmem:[#allocation8 + $0x30] sm:$0xf]
    %v698 = vld [vmem:[#allocation8 + $0x34] sm:$0xf]
    %v699 = vld [vmem:[#allocation8 + $0x38] sm:$0xf]
    %v700 = vld [vmem:[#allocation8 + $0x3c] sm:$0xf]
    %v701 = vld [vmem:[#allocation8 + $0x40] sm:$0xf]
    %v702 = vld [vmem:[#allocation8 + $0x44] sm:$0xf]
    %v703 = vld [vmem:[#allocation8 + $0x48] sm:$0xf]
    %v704 = vld [vmem:[#allocation8 + $0x4c] sm:$0xf]
    %v705 = vld [vmem:[#allocation8 + $0x50] sm:$0xf]
    %v706 = vld [vmem:[#allocation8 + $0x54] sm:$0xf]
    %v707 = vld [vmem:[#allocation8 + $0x58] sm:$0xf]
    %v708 = vld [vmem:[#allocation8 + $0x5c] sm:$0xf]
    %v709 = vld [vmem:[#allocation8 + $0x60] sm:$0xf]
    %v710 = vld [vmem:[#allocation8 + $0x64] sm:$0xf]
    %v711 = vld [vmem:[#allocation8 + $0x68] sm:$0xf]
    %v712 = vld [vmem:[#allocation8 + $0x6c] sm:$0xf]
    %v713 = vld [vmem:[#allocation8 + $0x70] sm:$0xf]
    %v714 = vld [vmem:[#allocation8 + $0x74] sm:$0xf]
    %v715 = vld [vmem:[#allocation8 + $0x78] sm:$0xf]
    %v716 = vld [vmem:[#allocation8 + $0x7c] sm:$0xf]
    %v717 = vld [vmem:[#allocation8 + $0x80] sm:$0xf]
    %v718 = vld [vmem:[#allocation8 + $0x84] sm:$0xf]
    %v719 = vld [vmem:[#allocation8 + $0x88] sm:$0xf]
    %v720 = vld [vmem:[#allocation8 + $0x8c] sm:$0xf]
    %v721 = vld [vmem:[#allocation8 + $0x90] sm:$0xf]
    %v722 = vld [vmem:[#allocation8 + $0x94] sm:$0xf]
    %v723 = vld [vmem:[#allocation8 + $0x98] sm:$0xf]
    %v724 = vld [vmem:[#allocation8 + $0x9c] sm:$0xf]
    %v725 = vld [vmem:[#allocation8 + $0xa0] sm:$0xf]
    %v726 = vld [vmem:[#allocation8 + $0xa4] sm:$0xf]
    %v727 = vld [vmem:[#allocation8 + $0xa8] sm:$0xf]
    %v728 = vld [vmem:[#allocation8 + $0xac] sm:$0xf]
    %v729 = vld [vmem:[#allocation8 + $0xb0] sm:$0xf]
    %v730 = vld [vmem:[#allocation8 + $0xb4] sm:$0xf]
    %v731 = vld [vmem:[#allocation8 + $0xb8] sm:$0xf]
    %v732 = vld [vmem:[#allocation8 + $0xbc] sm:$0xf]
    %v733 = vld [vmem:[#allocation8 + $0xc0] sm:$0xf]
    %v734 = vld [vmem:[#allocation8 + $0xc4] sm:$0xf]
    %v735 = vld [vmem:[#allocation8 + $0xc8] sm:$0xf]
    %v736 = vld [vmem:[#allocation8 + $0xcc] sm:$0xf]
    %v737 = vld [vmem:[#allocation8 + $0xd0] sm:$0xf]
    %v738 = vld [vmem:[#allocation8 + $0xd4] sm:$0xf]
    %v739 = vld [vmem:[#allocation8 + $0xd8] sm:$0xf]
    %v740 = vld [vmem:[#allocation8 + $0xdc] sm:$0xf]
    %v741 = vld [vmem:[#allocation8 + $0xe0] sm:$0xf]
    %v742 = vld [vmem:[#allocation8 + $0xe4] sm:$0xf]
    %v743 = vld [vmem:[#allocation8 + $0xe8] sm:$0xf]
    %v744 = vld [vmem:[#allocation8 + $0xec] sm:$0xf]
    %v745 = vld [vmem:[#allocation8 + $0xf0] sm:$0xf]
    %v746 = vld [vmem:[#allocation8 + $0xf4] sm:$0xf]
    %v747 = vld [vmem:[#allocation8 + $0xf8] sm:$0xf]
    %v748 = vld [vmem:[#allocation8 + $0xfc] sm:$0xf]
    %v749 = vld [vmem:[#allocation8 + $0x100] sm:$0xf]
    %v750 = vld [vmem:[#allocation8 + $0x104] sm:$0xf]
    %v751 = vld [vmem:[#allocation8 + $0x108] sm:$0xf]
    %v752 = vld [vmem:[#allocation8 + $0x10c] sm:$0xf]
    %v753 = vld [vmem:[#allocation8 + $0x110] sm:$0xf]
    %v754 = vld [vmem:[#allocation8 + $0x114] sm:$0xf]
    %v755 = vld [vmem:[#allocation8 + $0x118] sm:$0xf]
    %v756 = vld [vmem:[#allocation8 + $0x11c] sm:$0xf]
    %v757 = vld [vmem:[#allocation8 + $0x120] sm:$0xf]
    %v758 = vld [vmem:[#allocation8 + $0x124] sm:$0xf]
    %v759 = vld [vmem:[#allocation8 + $0x128] sm:$0xf]
    %v760 = vld [vmem:[#allocation8 + $0x12c] sm:$0xf]
    %v761 = vld [vmem:[#allocation8 + $0x130] sm:$0xf]
    %v762 = vld [vmem:[#allocation8 + $0x134] sm:$0xf]
    %v763 = vld [vmem:[#allocation8 + $0x138] sm:$0xf]
    %v764 = vld [vmem:[#allocation8 + $0x13c] sm:$0xf]
    %v765 = vld [vmem:[#allocation8 + $0x140] sm:$0xf]
    %v766 = vld [vmem:[#allocation8 + $0x144] sm:$0xf]
    %v767 = vld [vmem:[#allocation8 + $0x148] sm:$0xf]
    %v768 = vld [vmem:[#allocation8 + $0x14c] sm:$0xf]
    %v769 = vld [vmem:[#allocation8 + $0x150] sm:$0xf]
    %v770 = vld [vmem:[#allocation8 + $0x154] sm:$0xf]
    %v771 = vld [vmem:[#allocation8 + $0x158] sm:$0xf]
    %v772 = vld [vmem:[#allocation8 + $0x15c] sm:$0xf]
    %v773 = vld [vmem:[#allocation8 + $0x160] sm:$0xf]
    %v774 = vld [vmem:[#allocation8 + $0x164] sm:$0xf]
    %v775 = vld [vmem:[#allocation8 + $0x168] sm:$0xf]
    %v776 = vld [vmem:[#allocation8 + $0x16c] sm:$0xf]
    %v777 = vld [vmem:[#allocation8 + $0x170] sm:$0xf]
    %v778 = vld [vmem:[#allocation8 + $0x174] sm:$0xf]
    %v779 = vld [vmem:[#allocation8 + $0x178] sm:$0xf]
    %v780 = vld [vmem:[#allocation8 + $0x17c] sm:$0xf]
    %v781 = vld [vmem:[#allocation8 + $0x180] sm:$0xf]
    %v782 = vld [vmem:[#allocation8 + $0x184] sm:$0xf]
    %v783 = vld [vmem:[#allocation8 + $0x188] sm:$0xf]
    %v784 = vld [vmem:[#allocation8 + $0x18c] sm:$0xf]
    %v785 = vld [vmem:[#allocation8 + $0x190] sm:$0xf]
    %v786 = vld [vmem:[#allocation8 + $0x194] sm:$0xf]
    %v787 = vld [vmem:[#allocation8 + $0x198] sm:$0xf]
    %v788 = vld [vmem:[#allocation8 + $0x19c] sm:$0xf]
    %v789 = vld [vmem:[#allocation8 + $0x1a0] sm:$0xf]
    %v790 = vld [vmem:[#allocation8 + $0x1a4] sm:$0xf]
    %v791 = vld [vmem:[#allocation8 + $0x1a8] sm:$0xf]
    %v792 = vld [vmem:[#allocation8 + $0x1ac] sm:$0xf]
    %v793 = vld [vmem:[#allocation8 + $0x1b0] sm:$0xf]
    %v794 = vld [vmem:[#allocation8 + $0x1b4] sm:$0xf]
    %v795 = vld [vmem:[#allocation8 + $0x1b8] sm:$0xf]
    %v796 = vld [vmem:[#allocation8 + $0x1bc] sm:$0xf]
    %v797 = vld [vmem:[#allocation8 + $0x1c0] sm:$0xf]
    %v798 = vld [vmem:[#allocation8 + $0x1c4] sm:$0xf]
    %v799 = vld [vmem:[#allocation8 + $0x1c8] sm:$0xf]
    %v800 = vld [vmem:[#allocation8 + $0x1cc] sm:$0xf]
    %v801 = vld [vmem:[#allocation8 + $0x1d0] sm:$0xf]
    %v802 = vld [vmem:[#allocation8 + $0x1d4] sm:$0xf]
    %v803 = vld [vmem:[#allocation8 + $0x1d8] sm:$0xf]
    %v804 = vld [vmem:[#allocation8 + $0x1dc] sm:$0xf]
    %v805 = vld [vmem:[#allocation8 + $0x1e0] sm:$0xf]
    %v806 = vld [vmem:[#allocation8 + $0x1e4] sm:$0xf]
    %v807 = vld [vmem:[#allocation8 + $0x1e8] sm:$0xf]
    %v808 = vld [vmem:[#allocation8 + $0x1ec] sm:$0xf]
    %v809 = vld [vmem:[#allocation8 + $0x1f0] sm:$0xf]
    %v810 = vld [vmem:[#allocation8 + $0x1f4] sm:$0xf]
    %v811 = vld [vmem:[#allocation8 + $0x1f8] sm:$0xf]
    %v812 = vld [vmem:[#allocation8 + $0x1fc] sm:$0xf]
    %v813 = vld [vmem:[#allocation8 + $0x200] sm:$0xf]
    %v814 = vld [vmem:[#allocation8 + $0x204] sm:$0xf]
    %v815 = vld [vmem:[#allocation8 + $0x208] sm:$0xf]
    %v816 = vld [vmem:[#allocation8 + $0x20c] sm:$0xf]
    %v817 = vld [vmem:[#allocation8 + $0x210] sm:$0xf]
    %v818 = vld [vmem:[#allocation8 + $0x214] sm:$0xf]
    %v819 = vld [vmem:[#allocation8 + $0x218] sm:$0xf]
    %v820 = vld [vmem:[#allocation8 + $0x21c] sm:$0xf]
    %v821 = vld [vmem:[#allocation8 + $0x220] sm:$0xf]
    %v822 = vld [vmem:[#allocation8 + $0x224] sm:$0xf]
    %v823 = vld [vmem:[#allocation8 + $0x228] sm:$0xf]
    %v824 = vld [vmem:[#allocation8 + $0x22c] sm:$0xf]
    %v825 = vld [vmem:[#allocation8 + $0x230] sm:$0xf]
    %v826 = vld [vmem:[#allocation8 + $0x234] sm:$0xf]
    %v827 = vld [vmem:[#allocation8 + $0x238] sm:$0xf]
    %v828 = vld [vmem:[#allocation8 + $0x23c] sm:$0xf]
    %v829 = vld [vmem:[#allocation8 + $0x240] sm:$0xf]
    %v830 = vld [vmem:[#allocation8 + $0x244] sm:$0xf]
    %v831 = vld [vmem:[#allocation8 + $0x248] sm:$0xf]
    %v832 = vld [vmem:[#allocation8 + $0x24c] sm:$0xf]
    %v833 = vld [vmem:[#allocation8 + $0x250] sm:$0xf]
    %v834 = vld [vmem:[#allocation8 + $0x254] sm:$0xf]
    %v835 = vld [vmem:[#allocation8 + $0x258] sm:$0xf]
    %v836 = vld [vmem:[#allocation8 + $0x25c] sm:$0xf]
    %v837 = vld [vmem:[#allocation8 + $0x260] sm:$0xf]
    %v838 = vld [vmem:[#allocation8 + $0x264] sm:$0xf]
    %v839 = vld [vmem:[#allocation8 + $0x268] sm:$0xf]
    %v840 = vld [vmem:[#allocation8 + $0x26c] sm:$0xf]
    %v841 = vld [vmem:[#allocation8 + $0x270] sm:$0xf]
    %v842 = vld [vmem:[#allocation8 + $0x274] sm:$0xf]
    %v843 = vld [vmem:[#allocation8 + $0x278] sm:$0xf]
    %v844 = vld [vmem:[#allocation8 + $0x27c] sm:$0xf]
    %v845 = vld [vmem:[#allocation8 + $0x280] sm:$0xf]
    %v846 = vld [vmem:[#allocation8 + $0x284] sm:$0xf]
    %v847 = vld [vmem:[#allocation8 + $0x288] sm:$0xf]
    %v848 = vld [vmem:[#allocation8 + $0x28c] sm:$0xf]
    %v849 = vld [vmem:[#allocation8 + $0x290] sm:$0xf]
    %v850 = vld [vmem:[#allocation8 + $0x294] sm:$0xf]
    %v851 = vld [vmem:[#allocation8 + $0x298] sm:$0xf]
    %v852 = vld [vmem:[#allocation8 + $0x29c] sm:$0xf]
    %v853 = vld [vmem:[#allocation8 + $0x2a0] sm:$0xf]
    %v854 = vld [vmem:[#allocation8 + $0x2a4] sm:$0xf]
    %v855 = vld [vmem:[#allocation8 + $0x2a8] sm:$0xf]
    %v856 = vld [vmem:[#allocation8 + $0x2ac] sm:$0xf]
    %v857 = vld [vmem:[#allocation8 + $0x2b0] sm:$0xf]
    %v858 = vld [vmem:[#allocation8 + $0x2b4] sm:$0xf]
    %v859 = vld [vmem:[#allocation8 + $0x2b8] sm:$0xf]
    %v860 = vld [vmem:[#allocation8 + $0x2bc] sm:$0xf]
    %v861 = vld [vmem:[#allocation8 + $0x2c0] sm:$0xf]
    %v862 = vld [vmem:[#allocation8 + $0x2c4] sm:$0xf]
    %v863 = vld [vmem:[#allocation8 + $0x2c8] sm:$0xf]
    %v864 = vld [vmem:[#allocation8 + $0x2cc] sm:$0xf]
    %v865 = vld [vmem:[#allocation8 + $0x2d0] sm:$0xf]
    %v866 = vld [vmem:[#allocation8 + $0x2d4] sm:$0xf]
    %v867 = vld [vmem:[#allocation8 + $0x2d8] sm:$0xf]
    %v868 = vld [vmem:[#allocation8 + $0x2dc] sm:$0xf]
    %v869 = vld [vmem:[#allocation8 + $0x2e0] sm:$0xf]
    %v870 = vld [vmem:[#allocation8 + $0x2e4] sm:$0xf]
    %v871 = vld [vmem:[#allocation8 + $0x2e8] sm:$0xf]
    %v872 = vld [vmem:[#allocation8 + $0x2ec] sm:$0xf]
    %v873 = vld [vmem:[#allocation8 + $0x2f0] sm:$0xf]
    %v874 = vld [vmem:[#allocation8 + $0x2f4] sm:$0xf]
    %v875 = vld [vmem:[#allocation8 + $0x2f8] sm:$0xf]
    %v876 = vld [vmem:[#allocation8 + $0x2fc] sm:$0xf]
    %v877 = vld [vmem:[#allocation8 + $0x300] sm:$0xf]
    %v878 = vld [vmem:[#allocation8 + $0x304] sm:$0xf]
    %v879 = vld [vmem:[#allocation8 + $0x308] sm:$0xf]
    %v880 = vld [vmem:[#allocation8 + $0x30c] sm:$0xf]
    %v881 = vld [vmem:[#allocation8 + $0x310] sm:$0xf]
    %v882 = vld [vmem:[#allocation8 + $0x314] sm:$0xf]
    %v883 = vld [vmem:[#allocation8 + $0x318] sm:$0xf]
    %v884 = vld [vmem:[#allocation8 + $0x31c] sm:$0xf]
    %v885 = vld [vmem:[#allocation8 + $0x320] sm:$0xf]
    %v886 = vld [vmem:[#allocation8 + $0x324] sm:$0xf]
    %v887 = vld [vmem:[#allocation8 + $0x328] sm:$0xf]
    %v888 = vld [vmem:[#allocation8 + $0x32c] sm:$0xf]
    %v889 = vld [vmem:[#allocation8 + $0x330] sm:$0xf]
    %v890 = vld [vmem:[#allocation8 + $0x334] sm:$0xf]
    %v891 = vld [vmem:[#allocation8 + $0x338] sm:$0xf]
    %v892 = vld [vmem:[#allocation8 + $0x33c] sm:$0xf]
    %v893 = vld [vmem:[#allocation8 + $0x340] sm:$0xf]
    %v894 = vld [vmem:[#allocation8 + $0x344] sm:$0xf]
    %v895 = vld [vmem:[#allocation8 + $0x348] sm:$0xf]
    %v896 = vld [vmem:[#allocation8 + $0x34c] sm:$0xf]
    %v897 = vld [vmem:[#allocation8 + $0x350] sm:$0xf]
    %v898 = vld [vmem:[#allocation8 + $0x354] sm:$0xf]
    %v899 = vld [vmem:[#allocation8 + $0x358] sm:$0xf]
    %v900 = vld [vmem:[#allocation8 + $0x35c] sm:$0xf]
    %v901 = vld [vmem:[#allocation8 + $0x360] sm:$0xf]
    %v902 = vld [vmem:[#allocation8 + $0x364] sm:$0xf]
    %v903 = vld [vmem:[#allocation8 + $0x368] sm:$0xf]
    %v904 = vld [vmem:[#allocation8 + $0x36c] sm:$0xf]
    %v905 = vld [vmem:[#allocation8 + $0x370] sm:$0xf]
    %v906 = vld [vmem:[#allocation8 + $0x374] sm:$0xf]
    %v907 = vld [vmem:[#allocation8 + $0x378] sm:$0xf]
    %v908 = vld [vmem:[#allocation8 + $0x37c] sm:$0xf]
    %v909 = vld [vmem:[#allocation8 + $0x380] sm:$0xf]
    %v910 = vld [vmem:[#allocation8 + $0x384] sm:$0xf]
    %v911 = vld [vmem:[#allocation8 + $0x388] sm:$0xf]
    %v912 = vld [vmem:[#allocation8 + $0x38c] sm:$0xf]
    %v913 = vld [vmem:[#allocation8 + $0x390] sm:$0xf]
    %v914 = vld [vmem:[#allocation8 + $0x394] sm:$0xf]
    %v915 = vld [vmem:[#allocation8 + $0x398] sm:$0xf]
    %v916 = vld [vmem:[#allocation8 + $0x39c] sm:$0xf]
    %v917 = vld [vmem:[#allocation8 + $0x3a0] sm:$0xf]
    %v918 = vld [vmem:[#allocation8 + $0x3a4] sm:$0xf]
    %v919 = vld [vmem:[#allocation8 + $0x3a8] sm:$0xf]
    %v920 = vld [vmem:[#allocation8 + $0x3ac] sm:$0xf]
    %v921 = vld [vmem:[#allocation8 + $0x3b0] sm:$0xf]
    %v922 = vld [vmem:[#allocation8 + $0x3b4] sm:$0xf]
    %v923 = vld [vmem:[#allocation8 + $0x3b8] sm:$0xf]
    %v924 = vld [vmem:[#allocation8 + $0x3bc] sm:$0xf]
    %v925 = vld [vmem:[#allocation8 + $0x3c0] sm:$0xf]
    %v926 = vld [vmem:[#allocation8 + $0x3c4] sm:$0xf]
    %v927 = vld [vmem:[#allocation8 + $0x3c8] sm:$0xf]
    %v928 = vld [vmem:[#allocation8 + $0x3cc] sm:$0xf]
    %v929 = vld [vmem:[#allocation8 + $0x3d0] sm:$0xf]
    %v930 = vld [vmem:[#allocation8 + $0x3d4] sm:$0xf]
    %v931 = vld [vmem:[#allocation8 + $0x3d8] sm:$0xf]
    %v932 = vld [vmem:[#allocation8 + $0x3dc] sm:$0xf]
    %v933 = vld [vmem:[#allocation8 + $0x3e0] sm:$0xf]
    %v934 = vld [vmem:[#allocation8 + $0x3e4] sm:$0xf]
    %v935 = vld [vmem:[#allocation8 + $0x3e8] sm:$0xf]
    %v936 = vld [vmem:[#allocation8 + $0x3ec] sm:$0xf]
    %v937 = vld [vmem:[#allocation8 + $0x3f0] sm:$0xf]
    %v938 = vld [vmem:[#allocation8 + $0x3f4] sm:$0xf]
    %v939 = vld [vmem:[#allocation8 + $0x3f8] sm:$0xf]
    %v940 = vld [vmem:[#allocation8 + $0x3fc] sm:$0xf]
    %v941 = vld [vmem:[%s5] sm:$0x1]
    %v943 = vlaneseq
    %v944 = vshrl.u32 %v943, 7
    %v945 = vsub.s32 0, %v944
    %v946 = vrot.slane %v941, %v945
    %v1204 = vunpack.c.l.b16 %v685
    %v1205 = vunpack.c.l.b16 %v686
    %v1206 = vunpack.c.l.b16 %v687
    %v1207 = vunpack.c.l.b16 %v688
    %v1208 = vunpack.c.l.b16 %v689
    %v1209 = vunpack.c.l.b16 %v690
    %v1210 = vunpack.c.l.b16 %v691
    %v1211 = vunpack.c.l.b16 %v692
    %v1212 = vunpack.c.l.b16 %v693
    %v1213 = vunpack.c.l.b16 %v694
    %v1214 = vunpack.c.l.b16 %v695
    %v1215 = vunpack.c.l.b16 %v696
    %v1216 = vunpack.c.l.b16 %v697
    %v1217 = vunpack.c.l.b16 %v698
    %v1218 = vunpack.c.l.b16 %v699
    %v1219 = vunpack.c.l.b16 %v700
    %v1220 = vunpack.c.l.b16 %v701
    %v1221 = vunpack.c.l.b16 %v702
    %v1222 = vunpack.c.l.b16 %v703
    %v1223 = vunpack.c.l.b16 %v704
    %v1224 = vunpack.c.l.b16 %v705
    %v1225 = vunpack.c.l.b16 %v706
    %v1226 = vunpack.c.l.b16 %v707
    %v1227 = vunpack.c.l.b16 %v708
    %v1228 = vunpack.c.l.b16 %v709
    %v1229 = vunpack.c.l.b16 %v710
    %v1230 = vunpack.c.l.b16 %v711
    %v1231 = vunpack.c.l.b16 %v712
    %v1232 = vunpack.c.l.b16 %v713
    %v1233 = vunpack.c.l.b16 %v714
    %v1234 = vunpack.c.l.b16 %v715
    %v1235 = vunpack.c.l.b16 %v716
    %v1236 = vunpack.c.l.b16 %v717
    %v1237 = vunpack.c.l.b16 %v718
    %v1238 = vunpack.c.l.b16 %v719
    %v1239 = vunpack.c.l.b16 %v720
    %v1240 = vunpack.c.l.b16 %v721
    %v1241 = vunpack.c.l.b16 %v722
    %v1242 = vunpack.c.l.b16 %v723
    %v1243 = vunpack.c.l.b16 %v724
    %v1244 = vunpack.c.l.b16 %v725
    %v1245 = vunpack.c.l.b16 %v726
    %v1246 = vunpack.c.l.b16 %v727
    %v1247 = vunpack.c.l.b16 %v728
    %v1248 = vunpack.c.l.b16 %v729
    %v1249 = vunpack.c.l.b16 %v730
    %v1250 = vunpack.c.l.b16 %v731
    %v1251 = vunpack.c.l.b16 %v732
    %v1252 = vunpack.c.l.b16 %v733
    %v1253 = vunpack.c.l.b16 %v734
    %v1254 = vunpack.c.l.b16 %v735
    %v1255 = vunpack.c.l.b16 %v736
    %v1256 = vunpack.c.l.b16 %v737
    %v1257 = vunpack.c.l.b16 %v738
    %v1258 = vunpack.c.l.b16 %v739
    %v1259 = vunpack.c.l.b16 %v740
    %v1260 = vunpack.c.l.b16 %v741
    %v1261 = vunpack.c.l.b16 %v742
    %v1262 = vunpack.c.l.b16 %v743
    %v1263 = vunpack.c.l.b16 %v744
    %v1264 = vunpack.c.l.b16 %v745
    %v1265 = vunpack.c.l.b16 %v746
    %v1266 = vunpack.c.l.b16 %v747
    %v1267 = vunpack.c.l.b16 %v748
    %v1268 = vunpack.c.l.b16 %v749
    %v1269 = vunpack.c.l.b16 %v750
    %v1270 = vunpack.c.l.b16 %v751
    %v1271 = vunpack.c.l.b16 %v752
    %v1272 = vunpack.c.l.b16 %v753
    %v1273 = vunpack.c.l.b16 %v754
    %v1274 = vunpack.c.l.b16 %v755
    %v1275 = vunpack.c.l.b16 %v756
    %v1276 = vunpack.c.l.b16 %v757
    %v1277 = vunpack.c.l.b16 %v758
    %v1278 = vunpack.c.l.b16 %v759
    %v1279 = vunpack.c.l.b16 %v760
    %v1280 = vunpack.c.l.b16 %v761
    %v1281 = vunpack.c.l.b16 %v762
    %v1282 = vunpack.c.l.b16 %v763
    %v1283 = vunpack.c.l.b16 %v764
    %v1284 = vunpack.c.l.b16 %v765
    %v1285 = vunpack.c.l.b16 %v766
    %v1286 = vunpack.c.l.b16 %v767
    %v1287 = vunpack.c.l.b16 %v768
    %v1288 = vunpack.c.l.b16 %v769
    %v1289 = vunpack.c.l.b16 %v770
    %v1290 = vunpack.c.l.b16 %v771
    %v1291 = vunpack.c.l.b16 %v772
    %v1292 = vunpack.c.l.b16 %v773
    %v1293 = vunpack.c.l.b16 %v774
    %v1294 = vunpack.c.l.b16 %v775
    %v1295 = vunpack.c.l.b16 %v776
    %v1296 = vunpack.c.l.b16 %v777
    %v1297 = vunpack.c.l.b16 %v778
    %v1298 = vunpack.c.l.b16 %v779
    %v1299 = vunpack.c.l.b16 %v780
    %v1300 = vunpack.c.l.b16 %v781
    %v1301 = vunpack.c.l.b16 %v782
    %v1302 = vunpack.c.l.b16 %v783
    %v1303 = vunpack.c.l.b16 %v784
    %v1304 = vunpack.c.l.b16 %v785
    %v1305 = vunpack.c.l.b16 %v786
    %v1306 = vunpack.c.l.b16 %v787
    %v1307 = vunpack.c.l.b16 %v788
    %v1308 = vunpack.c.l.b16 %v789
    %v1309 = vunpack.c.l.b16 %v790
    %v1310 = vunpack.c.l.b16 %v791
    %v1311 = vunpack.c.l.b16 %v792
    %v1312 = vunpack.c.l.b16 %v793
    %v1313 = vunpack.c.l.b16 %v794
    %v1314 = vunpack.c.l.b16 %v795
    %v1315 = vunpack.c.l.b16 %v796
    %v1316 = vunpack.c.l.b16 %v797
    %v1317 = vunpack.c.l.b16 %v798
    %v1318 = vunpack.c.l.b16 %v799
    %v1319 = vunpack.c.l.b16 %v800
    %v1320 = vunpack.c.l.b16 %v801
    %v1321 = vunpack.c.l.b16 %v802
    %v1322 = vunpack.c.l.b16 %v803
    %v1323 = vunpack.c.l.b16 %v804
    %v1324 = vunpack.c.l.b16 %v805
    %v1325 = vunpack.c.l.b16 %v806
    %v1326 = vunpack.c.l.b16 %v807
    %v1327 = vunpack.c.l.b16 %v808
    %v1328 = vunpack.c.l.b16 %v809
    %v1329 = vunpack.c.l.b16 %v810
    %v1330 = vunpack.c.l.b16 %v811
    %v1331 = vunpack.c.l.b16 %v812
    %v1332 = vunpack.c.l.b16 %v813
    %v1333 = vunpack.c.l.b16 %v814
    %v1334 = vunpack.c.l.b16 %v815
    %v1335 = vunpack.c.l.b16 %v816
    %v1336 = vunpack.c.l.b16 %v817
    %v1337 = vunpack.c.l.b16 %v818
    %v1338 = vunpack.c.l.b16 %v819
    %v1339 = vunpack.c.l.b16 %v820
    %v1340 = vunpack.c.l.b16 %v821
    %v1341 = vunpack.c.l.b16 %v822
    %v1342 = vunpack.c.l.b16 %v823
    %v1343 = vunpack.c.l.b16 %v824
    %v1344 = vunpack.c.l.b16 %v825
    %v1345 = vunpack.c.l.b16 %v826
    %v1346 = vunpack.c.l.b16 %v827
    %v1347 = vunpack.c.l.b16 %v828
    %v1348 = vunpack.c.l.b16 %v829
    %v1349 = vunpack.c.l.b16 %v830
    %v1350 = vunpack.c.l.b16 %v831
    %v1351 = vunpack.c.l.b16 %v832
    %v1352 = vunpack.c.l.b16 %v833
    %v1353 = vunpack.c.l.b16 %v834
    %v1354 = vunpack.c.l.b16 %v835
    %v1355 = vunpack.c.l.b16 %v836
    %v1356 = vunpack.c.l.b16 %v837
    %v1357 = vunpack.c.l.b16 %v838
    %v1358 = vunpack.c.l.b16 %v839
    %v1359 = vunpack.c.l.b16 %v840
    %v1360 = vunpack.c.l.b16 %v841
    %v1361 = vunpack.c.l.b16 %v842
    %v1362 = vunpack.c.l.b16 %v843
    %v1363 = vunpack.c.l.b16 %v844
    %v1364 = vunpack.c.l.b16 %v845
    %v1365 = vunpack.c.l.b16 %v846
    %v1366 = vunpack.c.l.b16 %v847
    %v1367 = vunpack.c.l.b16 %v848
    %v1368 = vunpack.c.l.b16 %v849
    %v1369 = vunpack.c.l.b16 %v850
    %v1370 = vunpack.c.l.b16 %v851
    %v1371 = vunpack.c.l.b16 %v852
    %v1372 = vunpack.c.l.b16 %v853
    %v1373 = vunpack.c.l.b16 %v854
    %v1374 = vunpack.c.l.b16 %v855
    %v1375 = vunpack.c.l.b16 %v856
    %v1376 = vunpack.c.l.b16 %v857
    %v1377 = vunpack.c.l.b16 %v858
    %v1378 = vunpack.c.l.b16 %v859
    %v1379 = vunpack.c.l.b16 %v860
    %v1380 = vunpack.c.l.b16 %v861
    %v1381 = vunpack.c.l.b16 %v862
    %v1382 = vunpack.c.l.b16 %v863
    %v1383 = vunpack.c.l.b16 %v864
    %v1384 = vunpack.c.l.b16 %v865
    %v1385 = vunpack.c.l.b16 %v866
    %v1386 = vunpack.c.l.b16 %v867
    %v1387 = vunpack.c.l.b16 %v868
    %v1388 = vunpack.c.l.b16 %v869
    %v1389 = vunpack.c.l.b16 %v870
    %v1390 = vunpack.c.l.b16 %v871
    %v1391 = vunpack.c.l.b16 %v872
    %v1392 = vunpack.c.l.b16 %v873
    %v1393 = vunpack.c.l.b16 %v874
    %v1394 = vunpack.c.l.b16 %v875
    %v1395 = vunpack.c.l.b16 %v876
    %v1396 = vunpack.c.l.b16 %v877
    %v1397 = vunpack.c.l.b16 %v878
    %v1398 = vunpack.c.l.b16 %v879
    %v1399 = vunpack.c.l.b16 %v880
    %v1400 = vunpack.c.l.b16 %v881
    %v1401 = vunpack.c.l.b16 %v882
    %v1402 = vunpack.c.l.b16 %v883
    %v1403 = vunpack.c.l.b16 %v884
    %v1404 = vunpack.c.l.b16 %v885
    %v1405 = vunpack.c.l.b16 %v886
    %v1406 = vunpack.c.l.b16 %v887
    %v1407 = vunpack.c.l.b16 %v888
    %v1408 = vunpack.c.l.b16 %v889
    %v1409 = vunpack.c.l.b16 %v890
    %v1410 = vunpack.c.l.b16 %v891
    %v1411 = vunpack.c.l.b16 %v892
    %v1412 = vunpack.c.l.b16 %v893
    %v1413 = vunpack.c.l.b16 %v894
    %v1414 = vunpack.c.l.b16 %v895
    %v1415 = vunpack.c.l.b16 %v896
    %v1416 = vunpack.c.l.b16 %v897
    %v1417 = vunpack.c.l.b16 %v898
    %v1418 = vunpack.c.l.b16 %v899
    %v1419 = vunpack.c.l.b16 %v900
    %v1420 = vunpack.c.l.b16 %v901
    %v1421 = vunpack.c.l.b16 %v902
    %v1422 = vunpack.c.l.b16 %v903
    %v1423 = vunpack.c.l.b16 %v904
    %v1424 = vunpack.c.l.b16 %v905
    %v1425 = vunpack.c.l.b16 %v906
    %v1426 = vunpack.c.l.b16 %v907
    %v1427 = vunpack.c.l.b16 %v908
    %v1428 = vunpack.c.l.b16 %v909
    %v1429 = vunpack.c.l.b16 %v910
    %v1430 = vunpack.c.l.b16 %v911
    %v1431 = vunpack.c.l.b16 %v912
    %v1432 = vunpack.c.l.b16 %v913
    %v1433 = vunpack.c.l.b16 %v914
    %v1434 = vunpack.c.l.b16 %v915
    %v1435 = vunpack.c.l.b16 %v916
    %v1436 = vunpack.c.l.b16 %v917
    %v1437 = vunpack.c.l.b16 %v918
    %v1438 = vunpack.c.l.b16 %v919
    %v1439 = vunpack.c.l.b16 %v920
    %v1440 = vunpack.c.l.b16 %v921
    %v1441 = vunpack.c.l.b16 %v922
    %v1442 = vunpack.c.l.b16 %v923
    %v1443 = vunpack.c.l.b16 %v924
    %v1444 = vunpack.c.l.b16 %v925
    %v1445 = vunpack.c.l.b16 %v926
    %v1446 = vunpack.c.l.b16 %v927
    %v1447 = vunpack.c.l.b16 %v928
    %v1448 = vunpack.c.l.b16 %v929
    %v1449 = vunpack.c.l.b16 %v930
    %v1450 = vunpack.c.l.b16 %v931
    %v1451 = vunpack.c.l.b16 %v932
    %v1452 = vunpack.c.l.b16 %v933
    %v1453 = vunpack.c.l.b16 %v934
    %v1454 = vunpack.c.l.b16 %v935
    %v1455 = vunpack.c.l.b16 %v936
    %v1456 = vunpack.c.l.b16 %v937
    %v1457 = vunpack.c.l.b16 %v938
    %v1458 = vunpack.c.l.b16 %v939
    %v1459 = vunpack.c.l.b16 %v940
    %v1460 = vpack.c.b16 %v1205, %v1204
    %v1461 = vpack.c.b16 %v1207, %v1206
    %v1462 = vpack.c.b16 %v1209, %v1208
    %v1463 = vpack.c.b16 %v1211, %v1210
    %v1464 = vpack.c.b16 %v1213, %v1212
    %v1465 = vpack.c.b16 %v1215, %v1214
    %v1466 = vpack.c.b16 %v1217, %v1216
    %v1467 = vpack.c.b16 %v1219, %v1218
    %v1468 = vpack.c.b16 %v1221, %v1220
    %v1469 = vpack.c.b16 %v1223, %v1222
    %v1470 = vpack.c.b16 %v1225, %v1224
    %v1471 = vpack.c.b16 %v1227, %v1226
    %v1472 = vpack.c.b16 %v1229, %v1228
    %v1473 = vpack.c.b16 %v1231, %v1230
    %v1474 = vpack.c.b16 %v1233, %v1232
    %v1475 = vpack.c.b16 %v1235, %v1234
    %v1476 = vpack.c.b16 %v1237, %v1236
    %v1477 = vpack.c.b16 %v1239, %v1238
    %v1478 = vpack.c.b16 %v1241, %v1240
    %v1479 = vpack.c.b16 %v1243, %v1242
    %v1480 = vpack.c.b16 %v1245, %v1244
    %v1481 = vpack.c.b16 %v1247, %v1246
    %v1482 = vpack.c.b16 %v1249, %v1248
    %v1483 = vpack.c.b16 %v1251, %v1250
    %v1484 = vpack.c.b16 %v1253, %v1252
    %v1485 = vpack.c.b16 %v1255, %v1254
    %v1486 = vpack.c.b16 %v1257, %v1256
    %v1487 = vpack.c.b16 %v1259, %v1258
    %v1488 = vpack.c.b16 %v1261, %v1260
    %v1489 = vpack.c.b16 %v1263, %v1262
    %v1490 = vpack.c.b16 %v1265, %v1264
    %v1491 = vpack.c.b16 %v1267, %v1266
    %v1492 = vpack.c.b16 %v1269, %v1268
    %v1493 = vpack.c.b16 %v1271, %v1270
    %v1494 = vpack.c.b16 %v1273, %v1272
    %v1495 = vpack.c.b16 %v1275, %v1274
    %v1496 = vpack.c.b16 %v1277, %v1276
    %v1497 = vpack.c.b16 %v1279, %v1278
    %v1498 = vpack.c.b16 %v1281, %v1280
    %v1499 = vpack.c.b16 %v1283, %v1282
    %v1500 = vpack.c.b16 %v1285, %v1284
    %v1501 = vpack.c.b16 %v1287, %v1286
    %v1502 = vpack.c.b16 %v1289, %v1288
    %v1503 = vpack.c.b16 %v1291, %v1290
    %v1504 = vpack.c.b16 %v1293, %v1292
    %v1505 = vpack.c.b16 %v1295, %v1294
    %v1506 = vpack.c.b16 %v1297, %v1296
    %v1507 = vpack.c.b16 %v1299, %v1298
    %v1508 = vpack.c.b16 %v1301, %v1300
    %v1509 = vpack.c.b16 %v1303, %v1302
    %v1510 = vpack.c.b16 %v1305, %v1304
    %v1511 = vpack.c.b16 %v1307, %v1306
    %v1512 = vpack.c.b16 %v1309, %v1308
    %v1513 = vpack.c.b16 %v1311, %v1310
    %v1514 = vpack.c.b16 %v1313, %v1312
    %v1515 = vpack.c.b16 %v1315, %v1314
    %v1516 = vpack.c.b16 %v1317, %v1316
    %v1517 = vpack.c.b16 %v1319, %v1318
    %v1518 = vpack.c.b16 %v1321, %v1320
    %v1519 = vpack.c.b16 %v1323, %v1322
    %v1520 = vpack.c.b16 %v1325, %v1324
    %v1521 = vpack.c.b16 %v1327, %v1326
    %v1522 = vpack.c.b16 %v1329, %v1328
    %v1523 = vpack.c.b16 %v1331, %v1330
    %v1524 = vpack.c.b16 %v1333, %v1332
    %v1525 = vpack.c.b16 %v1335, %v1334
    %v1526 = vpack.c.b16 %v1337, %v1336
    %v1527 = vpack.c.b16 %v1339, %v1338
    %v1528 = vpack.c.b16 %v1341, %v1340
    %v1529 = vpack.c.b16 %v1343, %v1342
    %v1530 = vpack.c.b16 %v1345, %v1344
    %v1531 = vpack.c.b16 %v1347, %v1346
    %v1532 = vpack.c.b16 %v1349, %v1348
    %v1533 = vpack.c.b16 %v1351, %v1350
    %v1534 = vpack.c.b16 %v1353, %v1352
    %v1535 = vpack.c.b16 %v1355, %v1354
    %v1536 = vpack.c.b16 %v1357, %v1356
    %v1537 = vpack.c.b16 %v1359, %v1358
    %v1538 = vpack.c.b16 %v1361, %v1360
    %v1539 = vpack.c.b16 %v1363, %v1362
    %v1540 = vpack.c.b16 %v1365, %v1364
    %v1541 = vpack.c.b16 %v1367, %v1366
    %v1542 = vpack.c.b16 %v1369, %v1368
    %v1543 = vpack.c.b16 %v1371, %v1370
    %v1544 = vpack.c.b16 %v1373, %v1372
    %v1545 = vpack.c.b16 %v1375, %v1374
    %v1546 = vpack.c.b16 %v1377, %v1376
    %v1547 = vpack.c.b16 %v1379, %v1378
    %v1548 = vpack.c.b16 %v1381, %v1380
    %v1549 = vpack.c.b16 %v1383, %v1382
    %v1550 = vpack.c.b16 %v1385, %v1384
    %v1551 = vpack.c.b16 %v1387, %v1386
    %v1552 = vpack.c.b16 %v1389, %v1388
    %v1553 = vpack.c.b16 %v1391, %v1390
    %v1554 = vpack.c.b16 %v1393, %v1392
    %v1555 = vpack.c.b16 %v1395, %v1394
    %v1556 = vpack.c.b16 %v1397, %v1396
    %v1557 = vpack.c.b16 %v1399, %v1398
    %v1558 = vpack.c.b16 %v1401, %v1400
    %v1559 = vpack.c.b16 %v1403, %v1402
    %v1560 = vpack.c.b16 %v1405, %v1404
    %v1561 = vpack.c.b16 %v1407, %v1406
    %v1562 = vpack.c.b16 %v1409, %v1408
    %v1563 = vpack.c.b16 %v1411, %v1410
    %v1564 = vpack.c.b16 %v1413, %v1412
    %v1565 = vpack.c.b16 %v1415, %v1414
    %v1566 = vpack.c.b16 %v1417, %v1416
    %v1567 = vpack.c.b16 %v1419, %v1418
    %v1568 = vpack.c.b16 %v1421, %v1420
    %v1569 = vpack.c.b16 %v1423, %v1422
    %v1570 = vpack.c.b16 %v1425, %v1424
    %v1571 = vpack.c.b16 %v1427, %v1426
    %v1572 = vpack.c.b16 %v1429, %v1428
    %v1573 = vpack.c.b16 %v1431, %v1430
    %v1574 = vpack.c.b16 %v1433, %v1432
    %v1575 = vpack.c.b16 %v1435, %v1434
    %v1576 = vpack.c.b16 %v1437, %v1436
    %v1577 = vpack.c.b16 %v1439, %v1438
    %v1578 = vpack.c.b16 %v1441, %v1440
    %v1579 = vpack.c.b16 %v1443, %v1442
    %v1580 = vpack.c.b16 %v1445, %v1444
    %v1581 = vpack.c.b16 %v1447, %v1446
    %v1582 = vpack.c.b16 %v1449, %v1448
    %v1583 = vpack.c.b16 %v1451, %v1450
    %v1584 = vpack.c.b16 %v1453, %v1452
    %v1585 = vpack.c.b16 %v1455, %v1454
    %v1586 = vpack.c.b16 %v1457, %v1456
    %v1587 = vpack.c.b16 %v1459, %v1458
    %1716 = vmatprep.subr.bf16.mxu0 0
    %1717 = vmatpush1.bf16.msra.mxu0 %v1467
    %1718 = vmatprep.subr.bf16.mxu0 0
    %1719 = vmatpush1.bf16.msra.mxu0 %v1466
    %1720 = vmatprep.subr.bf16.mxu0 0
    %1721 = vmatpush1.bf16.msra.mxu0 %v1465
    %1722 = vmatprep.subr.bf16.mxu0 0
    %1723 = vmatpush1.bf16.msra.mxu0 %v1464
    %1724 = vmatprep.subr.bf16.mxu0 0
    %1725 = vmatpush1.bf16.msra.mxu0 %v1463
    %1726 = vmatprep.subr.bf16.mxu0 0
    %1727 = vmatpush1.bf16.msra.mxu0 %v1462
    %1728 = vmatprep.subr.bf16.mxu0 0
    %1729 = vmatpush1.bf16.msra.mxu0 %v1461
    %1730 = vmatprep.subr.bf16.mxu0 0
    %1731 = vmatpush1.bf16.msra.mxu0 %v1460
    %1732 = vmatprep.subr.bf16.mxu0 0
    %1733 = vmatpush2.bf16.msra.mxu0 %v1475
    %1734 = vmatprep.subr.bf16.mxu0 0
    %1735 = vmatpush2.bf16.msra.mxu0 %v1474
    %1736 = vmatprep.subr.bf16.mxu0 0
    %1737 = vmatpush2.bf16.msra.mxu0 %v1473
    %1738 = vmatprep.subr.bf16.mxu0 0
    %1739 = vmatpush2.bf16.msra.mxu0 %v1472
    %1740 = vmatprep.subr.bf16.mxu0 0
    %1741 = vmatpush2.bf16.msra.mxu0 %v1471
    %1742 = vmatprep.subr.bf16.mxu0 0
    %1743 = vmatpush2.bf16.msra.mxu0 %v1470
    %1744 = vmatprep.subr.bf16.mxu0 0
    %1745 = vmatpush2.bf16.msra.mxu0 %v1469
    %1746 = vmatprep.subr.bf16.mxu0 0
    %1747 = vmatpush2.bf16.msra.mxu0 %v1468
    %1748 = vmatprep.mubr.bf16.mxu0 %v141
    %1749 = vmatmul.mubr.bf16.gmra.mxu0 %v140
    %v1750 = vpop.f32.mrf.mxu0
    %v1751 = vadd.f32 %v946, %v1750
    %v1752 = vpop.f32.mrf.mxu0
    %v1753 = vpop.f32.mrf.mxu0
    %v1754 = vpop.f32.mrf.mxu0
    %1755 = vdwg.mxu0
    %1756 = vmatprep.subr.bf16.mxu0 0
    %1757 = vmatpush1.bf16.msra.mxu0 %v1483
    %1758 = vmatprep.subr.bf16.mxu0 0
    %1759 = vmatpush1.bf16.msra.mxu0 %v1482
    %1760 = vmatprep.subr.bf16.mxu0 0
    %1761 = vmatpush1.bf16.msra.mxu0 %v1481
    %1762 = vmatprep.subr.bf16.mxu0 0
    %1763 = vmatpush1.bf16.msra.mxu0 %v1480
    %1764 = vmatprep.subr.bf16.mxu0 0
    %1765 = vmatpush1.bf16.msra.mxu0 %v1479
    %1766 = vmatprep.subr.bf16.mxu0 0
    %1767 = vmatpush1.bf16.msra.mxu0 %v1478
    %1768 = vmatprep.subr.bf16.mxu0 0
    %1769 = vmatpush1.bf16.msra.mxu0 %v1477
    %1770 = vmatprep.subr.bf16.mxu0 0
    %1771 = vmatpush1.bf16.msra.mxu0 %v1476
    %1772 = vmatprep.subr.bf16.mxu0 0
    %1773 = vmatpush2.bf16.msra.mxu0 %v1491
    %1774 = vmatprep.subr.bf16.mxu0 0
    %1775 = vmatpush2.bf16.msra.mxu0 %v1490
    %1776 = vmatprep.subr.bf16.mxu0 0
    %1777 = vmatpush2.bf16.msra.mxu0 %v1489
    %1778 = vmatprep.subr.bf16.mxu0 0
    %1779 = vmatpush2.bf16.msra.mxu0 %v1488
    %1780 = vmatprep.subr.bf16.mxu0 0
    %1781 = vmatpush2.bf16.msra.mxu0 %v1487
    %1782 = vmatprep.subr.bf16.mxu0 0
    %1783 = vmatpush2.bf16.msra.mxu0 %v1486
    %1784 = vmatprep.subr.bf16.mxu0 0
    %1785 = vmatpush2.bf16.msra.mxu0 %v1485
    %1786 = vmatprep.subr.bf16.mxu0 0
    %1787 = vmatpush2.bf16.msra.mxu0 %v1484
    %1788 = vmatprep.mubr.bf16.mxu0 %v143
    %1789 = vmatmul.mubr.bf16.gmra.mxu0 %v142
    %v1790 = vpop.f32.mrf.mxu0
    %v1791 = vadd.f32 %v1751, %v1790
    %v1792 = vpop.f32.mrf.mxu0
    %v1793 = vpop.f32.mrf.mxu0
    %v1794 = vpop.f32.mrf.mxu0
    %1795 = vdwg.mxu0
    %1796 = vmatprep.subr.bf16.mxu0 0
    %1797 = vmatpush1.bf16.msra.mxu0 %v1499
    %1798 = vmatprep.subr.bf16.mxu0 0
    %1799 = vmatpush1.bf16.msra.mxu0 %v1498
    %1800 = vmatprep.subr.bf16.mxu0 0
    %1801 = vmatpush1.bf16.msra.mxu0 %v1497
    %1802 = vmatprep.subr.bf16.mxu0 0
    %1803 = vmatpush1.bf16.msra.mxu0 %v1496
    %1804 = vmatprep.subr.bf16.mxu0 0
    %1805 = vmatpush1.bf16.msra.mxu0 %v1495
    %1806 = vmatprep.subr.bf16.mxu0 0
    %1807 = vmatpush1.bf16.msra.mxu0 %v1494
    %1808 = vmatprep.subr.bf16.mxu0 0
    %1809 = vmatpush1.bf16.msra.mxu0 %v1493
    %1810 = vmatprep.subr.bf16.mxu0 0
    %1811 = vmatpush1.bf16.msra.mxu0 %v1492
    %1812 = vmatprep.subr.bf16.mxu0 0
    %1813 = vmatpush2.bf16.msra.mxu0 %v1507
    %1814 = vmatprep.subr.bf16.mxu0 0
    %1815 = vmatpush2.bf16.msra.mxu0 %v1506
    %1816 = vmatprep.subr.bf16.mxu0 0
    %1817 = vmatpush2.bf16.msra.mxu0 %v1505
    %1818 = vmatprep.subr.bf16.mxu0 0
    %1819 = vmatpush2.bf16.msra.mxu0 %v1504
    %1820 = vmatprep.subr.bf16.mxu0 0
    %1821 = vmatpush2.bf16.msra.mxu0 %v1503
    %1822 = vmatprep.subr.bf16.mxu0 0
    %1823 = vmatpush2.bf16.msra.mxu0 %v1502
    %1824 = vmatprep.subr.bf16.mxu0 0
    %1825 = vmatpush2.bf16.msra.mxu0 %v1501
    %1826 = vmatprep.subr.bf16.mxu0 0
    %1827 = vmatpush2.bf16.msra.mxu0 %v1500
    %1828 = vmatprep.mubr.bf16.mxu0 %v145
    %1829 = vmatmul.mubr.bf16.gmra.mxu0 %v144
    %v1830 = vpop.f32.mrf.mxu0
    %v1831 = vadd.f32 %v1791, %v1830
    %v1832 = vpop.f32.mrf.mxu0
    %v1833 = vpop.f32.mrf.mxu0
    %v1834 = vpop.f32.mrf.mxu0
    %1835 = vdwg.mxu0
    %1836 = vmatprep.subr.bf16.mxu0 0
    %1837 = vmatpush1.bf16.msra.mxu0 %v1515
    %1838 = vmatprep.subr.bf16.mxu0 0
    %1839 = vmatpush1.bf16.msra.mxu0 %v1514
    %1840 = vmatprep.subr.bf16.mxu0 0
    %1841 = vmatpush1.bf16.msra.mxu0 %v1513
    %1842 = vmatprep.subr.bf16.mxu0 0
    %1843 = vmatpush1.bf16.msra.mxu0 %v1512
    %1844 = vmatprep.subr.bf16.mxu0 0
    %1845 = vmatpush1.bf16.msra.mxu0 %v1511
    %1846 = vmatprep.subr.bf16.mxu0 0
    %1847 = vmatpush1.bf16.msra.mxu0 %v1510
    %1848 = vmatprep.subr.bf16.mxu0 0
    %1849 = vmatpush1.bf16.msra.mxu0 %v1509
    %1850 = vmatprep.subr.bf16.mxu0 0
    %1851 = vmatpush1.bf16.msra.mxu0 %v1508
    %1852 = vmatprep.subr.bf16.mxu0 0
    %1853 = vmatpush2.bf16.msra.mxu0 %v1523
    %1854 = vmatprep.subr.bf16.mxu0 0
    %1855 = vmatpush2.bf16.msra.mxu0 %v1522
    %1856 = vmatprep.subr.bf16.mxu0 0
    %1857 = vmatpush2.bf16.msra.mxu0 %v1521
    %1858 = vmatprep.subr.bf16.mxu0 0
    %1859 = vmatpush2.bf16.msra.mxu0 %v1520
    %1860 = vmatprep.subr.bf16.mxu0 0
    %1861 = vmatpush2.bf16.msra.mxu0 %v1519
    %1862 = vmatprep.subr.bf16.mxu0 0
    %1863 = vmatpush2.bf16.msra.mxu0 %v1518
    %1864 = vmatprep.subr.bf16.mxu0 0
    %1865 = vmatpush2.bf16.msra.mxu0 %v1517
    %1866 = vmatprep.subr.bf16.mxu0 0
    %1867 = vmatpush2.bf16.msra.mxu0 %v1516
    %1868 = vmatprep.mubr.bf16.mxu0 %v147
    %1869 = vmatmul.mubr.bf16.gmra.mxu0 %v146
    %v1870 = vpop.f32.mrf.mxu0
    %v1871 = vadd.f32 %v1831, %v1870
    %v1872 = vpop.f32.mrf.mxu0
    %v1873 = vpop.f32.mrf.mxu0
    %v1874 = vpop.f32.mrf.mxu0
    %1875 = vdwg.mxu0
    %1876 = vmatprep.subr.bf16.mxu0 0
    %1877 = vmatpush1.bf16.msra.mxu0 %v1531
    %1878 = vmatprep.subr.bf16.mxu0 0
    %1879 = vmatpush1.bf16.msra.mxu0 %v1530
    %1880 = vmatprep.subr.bf16.mxu0 0
    %1881 = vmatpush1.bf16.msra.mxu0 %v1529
    %1882 = vmatprep.subr.bf16.mxu0 0
    %1883 = vmatpush1.bf16.msra.mxu0 %v1528
    %1884 = vmatprep.subr.bf16.mxu0 0
    %1885 = vmatpush1.bf16.msra.mxu0 %v1527
    %1886 = vmatprep.subr.bf16.mxu0 0
    %1887 = vmatpush1.bf16.msra.mxu0 %v1526
    %1888 = vmatprep.subr.bf16.mxu0 0
    %1889 = vmatpush1.bf16.msra.mxu0 %v1525
    %1890 = vmatprep.subr.bf16.mxu0 0
    %1891 = vmatpush1.bf16.msra.mxu0 %v1524
    %1892 = vmatprep.subr.bf16.mxu0 0
    %1893 = vmatpush2.bf16.msra.mxu0 %v1539
    %1894 = vmatprep.subr.bf16.mxu0 0
    %1895 = vmatpush2.bf16.msra.mxu0 %v1538
    %1896 = vmatprep.subr.bf16.mxu0 0
    %1897 = vmatpush2.bf16.msra.mxu0 %v1537
    %1898 = vmatprep.subr.bf16.mxu0 0
    %1899 = vmatpush2.bf16.msra.mxu0 %v1536
    %1900 = vmatprep.subr.bf16.mxu0 0
    %1901 = vmatpush2.bf16.msra.mxu0 %v1535
    %1902 = vmatprep.subr.bf16.mxu0 0
    %1903 = vmatpush2.bf16.msra.mxu0 %v1534
    %1904 = vmatprep.subr.bf16.mxu0 0
    %1905 = vmatpush2.bf16.msra.mxu0 %v1533
    %1906 = vmatprep.subr.bf16.mxu0 0
    %1907 = vmatpush2.bf16.msra.mxu0 %v1532
    %1908 = vmatprep.mubr.bf16.mxu0 %v149
    %1909 = vmatmul.mubr.bf16.gmra.mxu0 %v148
    %v1910 = vpop.f32.mrf.mxu0
    %v1911 = vadd.f32 %v1871, %v1910
    %v1912 = vpop.f32.mrf.mxu0
    %v1913 = vpop.f32.mrf.mxu0
    %v1914 = vpop.f32.mrf.mxu0
    %1915 = vdwg.mxu0
    %1916 = vmatprep.subr.bf16.mxu0 0
    %1917 = vmatpush1.bf16.msra.mxu0 %v1547
    %1918 = vmatprep.subr.bf16.mxu0 0
    %1919 = vmatpush1.bf16.msra.mxu0 %v1546
    %1920 = vmatprep.subr.bf16.mxu0 0
    %1921 = vmatpush1.bf16.msra.mxu0 %v1545
    %1922 = vmatprep.subr.bf16.mxu0 0
    %1923 = vmatpush1.bf16.msra.mxu0 %v1544
    %1924 = vmatprep.subr.bf16.mxu0 0
    %1925 = vmatpush1.bf16.msra.mxu0 %v1543
    %1926 = vmatprep.subr.bf16.mxu0 0
    %1927 = vmatpush1.bf16.msra.mxu0 %v1542
    %1928 = vmatprep.subr.bf16.mxu0 0
    %1929 = vmatpush1.bf16.msra.mxu0 %v1541
    %1930 = vmatprep.subr.bf16.mxu0 0
    %1931 = vmatpush1.bf16.msra.mxu0 %v1540
    %1932 = vmatprep.subr.bf16.mxu0 0
    %1933 = vmatpush2.bf16.msra.mxu0 %v1555
    %1934 = vmatprep.subr.bf16.mxu0 0
    %1935 = vmatpush2.bf16.msra.mxu0 %v1554
    %1936 = vmatprep.subr.bf16.mxu0 0
    %1937 = vmatpush2.bf16.msra.mxu0 %v1553
    %1938 = vmatprep.subr.bf16.mxu0 0
    %1939 = vmatpush2.bf16.msra.mxu0 %v1552
    %1940 = vmatprep.subr.bf16.mxu0 0
    %1941 = vmatpush2.bf16.msra.mxu0 %v1551
    %1942 = vmatprep.subr.bf16.mxu0 0
    %1943 = vmatpush2.bf16.msra.mxu0 %v1550
    %1944 = vmatprep.subr.bf16.mxu0 0
    %1945 = vmatpush2.bf16.msra.mxu0 %v1549
    %1946 = vmatprep.subr.bf16.mxu0 0
    %1947 = vmatpush2.bf16.msra.mxu0 %v1548
    %1948 = vmatprep.mubr.bf16.mxu0 %v151
    %1949 = vmatmul.mubr.bf16.gmra.mxu0 %v150
    %v1950 = vpop.f32.mrf.mxu0
    %v1951 = vadd.f32 %v1911, %v1950
    %v1952 = vpop.f32.mrf.mxu0
    %v1953 = vpop.f32.mrf.mxu0
    %v1954 = vpop.f32.mrf.mxu0
    %1955 = vdwg.mxu0
    %1956 = vmatprep.subr.bf16.mxu0 0
    %1957 = vmatpush1.bf16.msra.mxu0 %v1563
    %1958 = vmatprep.subr.bf16.mxu0 0
    %1959 = vmatpush1.bf16.msra.mxu0 %v1562
    %1960 = vmatprep.subr.bf16.mxu0 0
    %1961 = vmatpush1.bf16.msra.mxu0 %v1561
    %1962 = vmatprep.subr.bf16.mxu0 0
    %1963 = vmatpush1.bf16.msra.mxu0 %v1560
    %1964 = vmatprep.subr.bf16.mxu0 0
    %1965 = vmatpush1.bf16.msra.mxu0 %v1559
    %1966 = vmatprep.subr.bf16.mxu0 0
    %1967 = vmatpush1.bf16.msra.mxu0 %v1558
    %1968 = vmatprep.subr.bf16.mxu0 0
    %1969 = vmatpush1.bf16.msra.mxu0 %v1557
    %1970 = vmatprep.subr.bf16.mxu0 0
    %1971 = vmatpush1.bf16.msra.mxu0 %v1556
    %1972 = vmatprep.subr.bf16.mxu0 0
    %1973 = vmatpush2.bf16.msra.mxu0 %v1571
    %1974 = vmatprep.subr.bf16.mxu0 0
    %1975 = vmatpush2.bf16.msra.mxu0 %v1570
    %1976 = vmatprep.subr.bf16.mxu0 0
    %1977 = vmatpush2.bf16.msra.mxu0 %v1569
    %1978 = vmatprep.subr.bf16.mxu0 0
    %1979 = vmatpush2.bf16.msra.mxu0 %v1568
    %1980 = vmatprep.subr.bf16.mxu0 0
    %1981 = vmatpush2.bf16.msra.mxu0 %v1567
    %1982 = vmatprep.subr.bf16.mxu0 0
    %1983 = vmatpush2.bf16.msra.mxu0 %v1566
    %1984 = vmatprep.subr.bf16.mxu0 0
    %1985 = vmatpush2.bf16.msra.mxu0 %v1565
    %1986 = vmatprep.subr.bf16.mxu0 0
    %1987 = vmatpush2.bf16.msra.mxu0 %v1564
    %1988 = vmatprep.mubr.bf16.mxu0 %v153
    %1989 = vmatmul.mubr.bf16.gmra.mxu0 %v152
    %v1990 = vpop.f32.mrf.mxu0
    %v1991 = vadd.f32 %v1951, %v1990
    %v1992 = vpop.f32.mrf.mxu0
    %v1993 = vpop.f32.mrf.mxu0
    %v1994 = vpop.f32.mrf.mxu0
    %1995 = vdwg.mxu0
    %1996 = vmatprep.subr.bf16.mxu0 0
    %1997 = vmatpush1.bf16.msra.mxu0 %v1579
    %1998 = vmatprep.subr.bf16.mxu0 0
    %1999 = vmatpush1.bf16.msra.mxu0 %v1578
    %2000 = vmatprep.subr.bf16.mxu0 0
    %2001 = vmatpush1.bf16.msra.mxu0 %v1577
    %2002 = vmatprep.subr.bf16.mxu0 0
    %2003 = vmatpush1.bf16.msra.mxu0 %v1576
    %2004 = vmatprep.subr.bf16.mxu0 0
    %2005 = vmatpush1.bf16.msra.mxu0 %v1575
    %2006 = vmatprep.subr.bf16.mxu0 0
    %2007 = vmatpush1.bf16.msra.mxu0 %v1574
    %2008 = vmatprep.subr.bf16.mxu0 0
    %2009 = vmatpush1.bf16.msra.mxu0 %v1573
    %2010 = vmatprep.subr.bf16.mxu0 0
    %2011 = vmatpush1.bf16.msra.mxu0 %v1572
    %2012 = vmatprep.subr.bf16.mxu0 0
    %2013 = vmatpush2.bf16.msra.mxu0 %v1587
    %2014 = vmatprep.subr.bf16.mxu0 0
    %2015 = vmatpush2.bf16.msra.mxu0 %v1586
    %2016 = vmatprep.subr.bf16.mxu0 0
    %2017 = vmatpush2.bf16.msra.mxu0 %v1585
    %2018 = vmatprep.subr.bf16.mxu0 0
    %2019 = vmatpush2.bf16.msra.mxu0 %v1584
    %2020 = vmatprep.subr.bf16.mxu0 0
    %2021 = vmatpush2.bf16.msra.mxu0 %v1583
    %2022 = vmatprep.subr.bf16.mxu0 0
    %2023 = vmatpush2.bf16.msra.mxu0 %v1582
    %2024 = vmatprep.subr.bf16.mxu0 0
    %2025 = vmatpush2.bf16.msra.mxu0 %v1581
    %2026 = vmatprep.subr.bf16.mxu0 0
    %2027 = vmatpush2.bf16.msra.mxu0 %v1580
    %2028 = vmatprep.mubr.bf16.mxu0 %v155
    %2029 = vmatmul.mubr.bf16.gmra.mxu0 %v154
    %v2030 = vpop.f32.mrf.mxu0
    %v2031 = vadd.f32 %v1991, %v2030
    %v2032 = vpop.f32.mrf.mxu0
    %v2033 = vpop.f32.mrf.mxu0
    %v2034 = vpop.f32.mrf.mxu0
    %2035 = vdwg.mxu0
    %v2036 = vmax.f32 %v2031, 0.0
    %v2037 = vpack.c.bf16 %v2036, %v2036
    %v2038 = vld [vmem:[#allocation11] sm:$0xf]
    %v2039 = vld [vmem:[#allocation11 + $0x4] sm:$0xf]
    %v2040 = vld [vmem:[#allocation11 + $0x8] sm:$0xf]
    %v2041 = vld [vmem:[#allocation11 + $0xc] sm:$0xf]
    %v2042 = vld [vmem:[#allocation11 + $0x10] sm:$0xf]
    %v2043 = vld [vmem:[#allocation11 + $0x14] sm:$0xf]
    %v2044 = vld [vmem:[#allocation11 + $0x18] sm:$0xf]
    %v2045 = vld [vmem:[#allocation11 + $0x1c] sm:$0xf]
    %v2046 = vld [vmem:[#allocation11 + $0x20] sm:$0xf]
    %v2047 = vld [vmem:[#allocation11 + $0x24] sm:$0xf]
    %v2048 = vld [vmem:[#allocation11 + $0x28] sm:$0xf]
    %v2049 = vld [vmem:[#allocation11 + $0x2c] sm:$0xf]
    %v2050 = vld [vmem:[#allocation11 + $0x30] sm:$0xf]
    %v2051 = vld [vmem:[#allocation11 + $0x34] sm:$0xf]
    %v2052 = vld [vmem:[#allocation11 + $0x38] sm:$0xf]
    %v2053 = vld [vmem:[#allocation11 + $0x3c] sm:$0xf]
    %v2070 = vunpack.c.l.b16 %v2038
    %v2071 = vunpack.c.l.b16 %v2039
    %v2072 = vunpack.c.l.b16 %v2040
    %v2073 = vunpack.c.l.b16 %v2041
    %v2074 = vunpack.c.l.b16 %v2042
    %v2075 = vunpack.c.l.b16 %v2043
    %v2076 = vunpack.c.l.b16 %v2044
    %v2077 = vunpack.c.l.b16 %v2045
    %v2078 = vunpack.c.l.b16 %v2046
    %v2079 = vunpack.c.l.b16 %v2047
    %v2080 = vunpack.c.l.b16 %v2048
    %v2081 = vunpack.c.l.b16 %v2049
    %v2082 = vunpack.c.l.b16 %v2050
    %v2083 = vunpack.c.l.b16 %v2051
    %v2084 = vunpack.c.l.b16 %v2052
    %v2085 = vunpack.c.l.b16 %v2053
    %v2086 = vpack.c.b16 %v2071, %v2070
    %v2087 = vpack.c.b16 %v2073, %v2072
    %v2088 = vpack.c.b16 %v2075, %v2074
    %v2089 = vpack.c.b16 %v2077, %v2076
    %v2090 = vpack.c.b16 %v2079, %v2078
    %v2091 = vpack.c.b16 %v2081, %v2080
    %v2092 = vpack.c.b16 %v2083, %v2082
    %v2093 = vpack.c.b16 %v2085, %v2084
    %2102 = vmatprep.subr.bf16.mxu0 0
    %2103 = vmatpush1.bf16.msra.mxu0 %v2093
    %2104 = vmatprep.subr.bf16.mxu0 0
    %2105 = vmatpush1.bf16.msra.mxu0 %v2092
    %2106 = vmatprep.subr.bf16.mxu0 0
    %2107 = vmatpush1.bf16.msra.mxu0 %v2091
    %2108 = vmatprep.subr.bf16.mxu0 0
    %2109 = vmatpush1.bf16.msra.mxu0 %v2090
    %2110 = vmatprep.subr.bf16.mxu0 0
    %2111 = vmatpush1.bf16.msra.mxu0 %v2089
    %2112 = vmatprep.subr.bf16.mxu0 0
    %2113 = vmatpush1.bf16.msra.mxu0 %v2088
    %2114 = vmatprep.subr.bf16.mxu0 0
    %2115 = vmatpush1.bf16.msra.mxu0 %v2087
    %2116 = vmatprep.subr.bf16.mxu0 0
    %2117 = vmatpush1.bf16.msra.mxu0 %v2086
    %2118 = vmatprep.subr.bf16.mxu0 0
    %2119 = vmatpush2.bf16.msra.mxu0 0
    %2120 = vmatprep.subr.bf16.mxu0 0
    %2121 = vmatpush2.bf16.msra.mxu0 0
    %2122 = vmatprep.subr.bf16.mxu0 0
    %2123 = vmatpush2.bf16.msra.mxu0 0
    %2124 = vmatprep.subr.bf16.mxu0 0
    %2125 = vmatpush2.bf16.msra.mxu0 0
    %2126 = vmatprep.subr.bf16.mxu0 0
    %2127 = vmatpush2.bf16.msra.mxu0 0
    %2128 = vmatprep.subr.bf16.mxu0 0
    %2129 = vmatpush2.bf16.msra.mxu0 0
    %2130 = vmatprep.subr.bf16.mxu0 0
    %2131 = vmatpush2.bf16.msra.mxu0 0
    %2132 = vmatprep.subr.bf16.mxu0 0
    %2133 = vmatpush2.bf16.msra.mxu0 0
    %2134 = vmatprep.mubr.bf16.mxu0 0
    %2135 = vmatmul.mubr.bf16.gmra.mxu0 %v2037
    %v2136 = vpop.f32.mrf.mxu0
    %v2137 = vadd.f32 0.0, %v2136
    %v2138 = vpop.f32.mrf.mxu0
    %v2139 = vpop.f32.mrf.mxu0
    %v2140 = vpop.f32.mrf.mxu0
    %2141 = vdwg.mxu0
    %v2158 = vunpack.c.l.b16 %v669
    %v2159 = vunpack.c.l.b16 %v670
    %v2160 = vunpack.c.l.b16 %v671
    %v2161 = vunpack.c.l.b16 %v672
    %v2162 = vunpack.c.l.b16 %v673
    %v2163 = vunpack.c.l.b16 %v674
    %v2164 = vunpack.c.l.b16 %v675
    %v2165 = vunpack.c.l.b16 %v676
    %v2166 = vunpack.c.l.b16 %v677
    %v2167 = vunpack.c.l.b16 %v678
    %v2168 = vunpack.c.l.b16 %v679
    %v2169 = vunpack.c.l.b16 %v680
    %v2170 = vunpack.c.l.b16 %v681
    %v2171 = vunpack.c.l.b16 %v682
    %v2172 = vunpack.c.l.b16 %v683
    %v2173 = vunpack.c.l.b16 %v684
    %v2174 = vpack.c.b16 %v2159, %v2158
    %v2175 = vpack.c.b16 %v2161, %v2160
    %v2176 = vpack.c.b16 %v2163, %v2162
    %v2177 = vpack.c.b16 %v2165, %v2164
    %v2178 = vpack.c.b16 %v2167, %v2166
    %v2179 = vpack.c.b16 %v2169, %v2168
    %v2180 = vpack.c.b16 %v2171, %v2170
    %v2181 = vpack.c.b16 %v2173, %v2172
    %2190 = vmatprep.subr.bf16.mxu0 0
    %2191 = vmatpush1.bf16.msra.mxu0 %v2181
    %2192 = vmatprep.subr.bf16.mxu0 0
    %2193 = vmatpush1.bf16.msra.mxu0 %v2180
    %2194 = vmatprep.subr.bf16.mxu0 0
    %2195 = vmatpush1.bf16.msra.mxu0 %v2179
    %2196 = vmatprep.subr.bf16.mxu0 0
    %2197 = vmatpush1.bf16.msra.mxu0 %v2178
    %2198 = vmatprep.subr.bf16.mxu0 0
    %2199 = vmatpush1.bf16.msra.mxu0 %v2177
    %2200 = vmatprep.subr.bf16.mxu0 0
    %2201 = vmatpush1.bf16.msra.mxu0 %v2176
    %2202 = vmatprep.subr.bf16.mxu0 0
    %2203 = vmatpush1.bf16.msra.mxu0 %v2175
    %2204 = vmatprep.subr.bf16.mxu0 0
    %2205 = vmatpush1.bf16.msra.mxu0 %v2174
    %2206 = vmatprep.subr.bf16.mxu0 0
    %2207 = vmatpush2.bf16.msra.mxu0 0
    %2208 = vmatprep.subr.bf16.mxu0 0
    %2209 = vmatpush2.bf16.msra.mxu0 0
    %2210 = vmatprep.subr.bf16.mxu0 0
    %2211 = vmatpush2.bf16.msra.mxu0 0
    %2212 = vmatprep.subr.bf16.mxu0 0
    %2213 = vmatpush2.bf16.msra.mxu0 0
    %2214 = vmatprep.subr.bf16.mxu0 0
    %2215 = vmatpush2.bf16.msra.mxu0 0
    %2216 = vmatprep.subr.bf16.mxu0 0
    %2217 = vmatpush2.bf16.msra.mxu0 0
    %2218 = vmatprep.subr.bf16.mxu0 0
    %2219 = vmatpush2.bf16.msra.mxu0 0
    %2220 = vmatprep.subr.bf16.mxu0 0
    %2221 = vmatpush2.bf16.msra.mxu0 0
    %2222 = vmatprep.mubr.bf16.mxu0 0
    %2223 = vmatmul.mubr.bf16.gmra.mxu0 %v668
    %v2224 = vpop.f32.mrf.mxu0
    %v2225 = vadd.f32 %v2137, %v2224
    %v2226 = vpop.f32.mrf.mxu0
    %v2227 = vpop.f32.mrf.mxu0
    %v2228 = vpop.f32.mrf.mxu0
    %2229 = vdwg.mxu0
    %v2230 = vld [vmem:[%s8] sm:$0x1]
    %v2232 = vlaneseq
    %v2233 = vshrl.u32 %v2232, 7
    %v2234 = vsub.s32 0, %v2233
    %v2235 = vrot.slane %v2230, %v2234
    %v2237 = vadd.f32 %v2225, %v2235
    %2238 = vst [vmem:[#allocation13] sm:$0xff] %v2237
    // Predicated region
    $region62: #{tpu_custom_call.1} parent=1 // pred_check
      _
    $region63: #{tpu_custom_call.1} parent=1 // pred_check_branch
      %2240 = sbr.rel (0) target = $region65
    $region64: #{tpu_custom_call.1} parent=1 // pred_region
      %s2242 = ssub.s32 128, 128
      %2243 = vsyncadd [#allocation4], %s2242
      %s2245 = sshll.u32 [#allocation13], 4
      %s2246 = int_to_ptr.vmem [resolvable:$true] %s2245
      %2248 = dma.vmem_to_hbm [thread:$0]  %s2246, 128, %s9, [#allocation4]
    $region65: #{tpu_custom_call.1} parent=1 // pred_fallthru
      _
    // Predicated region
    $region66: #{tpu_custom_call.1} parent=1 // pred_check
      _
    $region67: #{tpu_custom_call.1} parent=1 // pred_check_branch
      %2250 = sbr.rel (0) target = $region69
    $region68: #{tpu_custom_call.1} parent=1 // pred_region
      %2251 = dma.done [#allocation4], 128
    $region69: #{tpu_custom_call.1} parent=1 // pred_fallthru
      _
    %2252 = vsyncpa [#allocation3], 1
    %2253 = vsyncpa [#allocation6], 1
    %2254 = vsyncpa [#allocation9], 1
    %2255 = vsyncpa [#allocation12], 1
    %2256 = vsyncpa [#allocation4], 1

</llo_original>
